<compile_context>
chip_gen: v7x
topology: tpu7x:2x2x1
jax: 0.10.0
libtpu: 0.0.40
codegen_flags: <defaults>
</compile_context>

<pallas_src>
import functools

import jax
import jax.numpy as jnp
from jax.experimental import pallas as pl
from jax.experimental.pallas import tpu as pltpu


def _round_up(x, m):
    return (x + m - 1) // m * m


def _vmem_capacity_bytes():
    """Generation-aware physical VMEM per core (v5e/v6e: 128 MiB, v7x: 64 MiB)."""
    try:
        return int(pltpu.get_tpu_info().vmem_capacity_bytes)
    except Exception:
        return 64 << 20          # conservative fallback == v7x per-core VMEM


# ------------------------------- Pallas kernel -------------------------------

def _conv_bias_relu_kernel(x_ref, w_ref, b_ref, o_ref, *, loop_offsets, fold,
                           m_rows):
    """o = ReLU( sum_i  x[off_i : off_i + m_rows] (kw-folded)  @  w[i]  + b ).

    x_ref : (rows_blk, Kin)                bf16  activation block
    w_ref : (n_loop, Kin*fold, Cout_pad)   bf16  per-tap weight matrices
    b_ref : (1, Cout_pad)                  f32   bias row (zero-padded)
    o_ref : (m_rows, Cout_pad)             bf16  lane-dense output block
    """
    acc = None
    for i, off in enumerate(loop_offsets):
        if fold == 1:
            op = x_ref[off:off + m_rows, :]
        else:
            # In-VMEM im2col along kw only.  Only taken when Kin % 128 == 0, so
            # the minor-dim concat is lane-tile aligned (pure data movement).
            op = jnp.concatenate(
                [x_ref[off + f:off + f + m_rows, :] for f in range(fold)],
                axis=-1)
        part = jnp.dot(op, w_ref[i], preferred_element_type=jnp.float32)
        # Accumulate in f32 values (no scratch-ref read-modify-write); Mosaic
        # can chain the partials in the MXU result buffer (MRB) on v7x.
        acc = part if acc is None else acc + part
    # f32 epilogue (bias + ReLU), single bf16 cast on the lane-dense store.
    o_ref[...] = jnp.maximum(acc + b_ref[...], 0.0).astype(o_ref.dtype)


# ---------------------------- ConvModule wrapper ------------------------------

def conv_module_forward(x, weight, bias, *, stride=1, padding=1, dilation=1,
                        out_dtype=jnp.bfloat16, single_buffer_weights=True):
    """ReLU(Conv2d(x, weight) + bias) with NCHW input — the default pangaea
    ConvModule forward (conv -> (no norm) -> ReLU).  Returns `out_dtype`
    (bf16 by default: activations already flow through the MXU in bf16)."""
    assert stride == 1 and dilation == 1, \
        "kernel implements the ConvModule defaults (stride=1, dilation=1, groups=1)"
    N, Cin, H, W = x.shape
    Cout, Cin_w, KH, KW = weight.shape
    assert Cin == Cin_w
    Hp, Wp = H + 2 * padding, W + 2 * padding
    Ho, Wo = Hp - KH + 1, Wp - KW + 1

    lane = 256 if Cout >= 192 else 128          # v6e/v7x MXU is 2x256x256
    Cout_pad = _round_up(Cout, lane)

    cap = _vmem_capacity_bytes()
    budget = cap // 2                           # target for per-step blocks

    # Single-pass layout glue (fused by XLA when the wrapper is jitted):
    # NCHW -> NHWC bf16 MXU operands; weights -> (KH, KW, Cin, Cout) bf16.
    x_nhwc = jnp.transpose(x, (0, 2, 3, 1)).astype(jnp.bfloat16)
    w_t = jnp.transpose(weight, (2, 3, 1, 0)).astype(jnp.bfloat16)
    b_row = jnp.pad(bias.astype(jnp.float32),
                    (0, Cout_pad - Cout)).reshape(1, Cout_pad)

    small_cin = Cin * KH * KW <= 256
    lane_aligned = (Cin % 128 == 0) and KW > 1

    if small_cin:
        # --- Path S: fold ALL taps into the contraction dim (K = Cin*KH*KW) ---
        Kfold = Cin * KH * KW
        xp = jnp.pad(x_nhwc,
                     ((0, 0), (padding, padding), (padding, padding), (0, 0)))
        pieces = [xp[:, kh:kh + Ho, kw:kw + Wo, :]
                  for kh in range(KH) for kw in range(KW)]
        patches = jnp.concatenate(pieces, axis=-1).reshape(N, Ho * Wo, Kfold)
        m_tot = Ho * Wo

        per_row = (2 * _round_up(Kfold, 128) * 2    # x block, double-buffered
                   + 2 * Cout_pad * 2               # bf16 out block, double-buffered
                   + Cout_pad * 4)                  # f32 accumulator values
        r_rows = min(_round_up(m_tot, 16), 2048,
                     max(16, (budget // per_row) // 16 * 16))
        nrb = -(-m_tot // r_rows)
        m_pad = nrb * r_rows
        x_arr = jnp.pad(patches, ((0, 0), (0, m_pad - m_tot), (0, 0)))

        w_k = jnp.pad(w_t.reshape(1, Kfold, Cout),
                      ((0, 0), (0, 0), (0, Cout_pad - Cout)))
        loop_offsets, fold, m_rows = (0,), 1, r_rows

        in_x_spec = pl.BlockSpec((None, r_rows, Kfold), lambda n, r: (n, r, 0))
        out_spec = pl.BlockSpec((None, r_rows, Cout_pad), lambda n, r: (n, r, 0))
        out_struct = jax.ShapeDtypeStruct((N, m_pad, Cout_pad), out_dtype)

        def _post(o):
            o = o[:, :m_tot, :Cout].reshape(N, Ho, Wo, Cout)
            return jnp.transpose(o, (0, 3, 1, 2))

        blocks_bytes = (per_row * r_rows
                        + _round_up(Kfold, 16) * Cout_pad * 2
                        + 16 * Cout_pad * 4)
        flops = 2 * N * m_tot * Kfold * Cout
        bytes_accessed = (x_arr.size * 2 + w_k.size * 2 + b_row.size * 4
                          + N * m_tot * Cout * jnp.dtype(out_dtype).itemsize)
    else:
        # --- Path L: large Cin — activations read from HBM exactly once -------
        Wp_pad = _round_up(Wp, 16)   # bf16 sublane tile: kh*Wp_pad shifts stay aligned views
        xp = jnp.pad(x_nhwc, ((0, 0), (padding, padding),
                              (padding, padding + Wp_pad - Wp), (0, 0)))
        flat = xp.reshape(N, Hp * Wp_pad, Cin)

        if lane_aligned:
            fold = KW                     # KW folded in-VMEM -> only KH matmuls
            loop_offsets = tuple(kh * Wp_pad for kh in range(KH))
            w_k = w_t.reshape(KH, KW * Cin, Cout)
        else:
            # TODO(synk): a non-lane-aligned Cin kw-fold needs a lane-shifting
            # concat; fall back to per-tap matmuls (kh offsets stay aligned).
            fold = 1
            loop_offsets = tuple(kh * Wp_pad + kw
                                 for kh in range(KH) for kw in range(KW))
            w_k = w_t.reshape(KH * KW, Cin, Cout)
        w_k = jnp.pad(w_k, ((0, 0), (0, 0), (0, Cout_pad - Cout)))

        per_img_row = (2 * Wp_pad * _round_up(Cin, 128) * 2        # x block
                       + 2 * Wp_pad * Cout_pad * 2                 # bf16 out block
                       + Wp_pad * _round_up(Cin * fold, 128) * 2   # folded operand
                       + 2 * Wp_pad * Cout_pad * 4)                # f32 acc values
        w_bytes = w_k.shape[0] * _round_up(w_k.shape[1], 16) * Cout_pad * 2
        r_h = max(1, min(Ho, (budget - w_bytes) // per_img_row))
        nrb = -(-Ho // r_h)
        m_rows = r_h * Wp_pad
        rows_blk = _round_up((r_h + KH - 1) * Wp_pad + (KW - 1), 16)

        # Row blocks with an explicit (KH-1)-row halo (<2% duplicated rows) so
        # the grid BlockSpec stays a plain Blocked tiling.
        flat = jnp.pad(flat, ((0, 0), (0, rows_blk), (0, 0)))
        x_arr = jnp.stack(
            [jax.lax.slice_in_dim(flat, r * r_h * Wp_pad,
                                  r * r_h * Wp_pad + rows_blk, axis=1)
             for r in range(nrb)], axis=1)              # (N, nrb, rows_blk, Cin)

        in_x_spec = pl.BlockSpec((None, None, rows_blk, Cin),
                                 lambda n, r: (n, r, 0, 0))
        out_spec = pl.BlockSpec((None, None, m_rows, Cout_pad),
                                lambda n, r: (n, r, 0, 0))
        out_struct = jax.ShapeDtypeStruct((N, nrb, m_rows, Cout_pad), out_dtype)

        def _post(o):
            o = o.reshape(N, nrb * r_h, Wp_pad, Cout_pad)[:, :Ho, :Wo, :Cout]
            return jnp.transpose(o, (0, 3, 1, 2))

        blocks_bytes = per_img_row * r_h + w_bytes + 16 * Cout_pad * 4
        flops = 2 * N * Ho * Wo * Cin * KH * KW * Cout
        bytes_accessed = (x_arr.size * 2 + w_k.size * 2 + b_row.size * 4
                          + N * Ho * Wo * Cout * jnp.dtype(out_dtype).itemsize)

    n_loop = len(loop_offsets)
    # Generation-aware VMEM limit: never clamp v5e/v6e to 64 MiB, and leave
    # ~8 MiB headroom below the physical ceiling on v7x.
    ceiling = max(cap - (8 << 20), cap * 3 // 4)
    vmem_limit = int(min(max(blocks_bytes + (4 << 20), 32 << 20), ceiling))

    def _invariant_spec(shape):
        idx = lambda n, r: (0,) * len(shape)
        if single_buffer_weights:
            # Grid-invariant blocks (constant index map): single-buffer them.
            return pl.BlockSpec(shape, idx, pipeline_mode=pl.Buffered(1))
        return pl.BlockSpec(shape, idx)

    kernel = functools.partial(_conv_bias_relu_kernel,
                               loop_offsets=loop_offsets, fold=fold,
                               m_rows=m_rows)
    out = pl.pallas_call(
        kernel,
        out_shape=out_struct,
        grid=(N, nrb),
        in_specs=[
            in_x_spec,
            _invariant_spec((n_loop, w_k.shape[1], Cout_pad)),
            _invariant_spec((1, Cout_pad)),
        ],
        out_specs=out_spec,
        compiler_params=pltpu.CompilerParams(
            dimension_semantics=("parallel", "parallel"),
            vmem_limit_bytes=vmem_limit),
        cost_estimate=pl.CostEstimate(flops=int(flops), transcendentals=0,
                                      bytes_accessed=int(bytes_accessed)),
    )(x_arr, w_k, b_row)
    return _post(out)


# ----------------------------------- main -------------------------------------

if __name__ == "__main__":
    key = jax.random.PRNGKey(0)
    k_x, k_w, k_b = jax.random.split(key, 3)

    # ConvModule(in_channels=4, out_channels=8, kernel_size=3, padding=1)
    N, Cin, H, W = 2, 4, 16, 16
    Cout, KH, KW = 8, 3, 3

    x = jax.random.normal(k_x, (N, Cin, H, W), dtype=jnp.float32)
    weight = jax.random.normal(k_w, (Cout, Cin, KH, KW), dtype=jnp.float32) * 0.1
    bias = jax.random.normal(k_b, (Cout,), dtype=jnp.float32) * 0.1

    # jit the wrapper so the NCHW->NHWC transpose / pad / bf16 cast / tap fold
    # fuse into a single XLA pass around the pallas_call (perf-review item).
    fwd = jax.jit(functools.partial(conv_module_forward, padding=1))
    try:
        y = jax.block_until_ready(fwd(x, weight, bias))
    except Exception:
        # Compatibility fallback if this JAX build rejects pl.Buffered(1)
        # single-buffering of the grid-invariant weight/bias blocks.
        fwd = jax.jit(functools.partial(conv_module_forward, padding=1,
                                        single_buffer_weights=False))
        y = jax.block_until_ready(fwd(x, weight, bias))

    # Reference (PyTorch Conv2d + bias + ReLU semantics).  The kernel feeds
    # bf16 operands to the MXU with f32 accumulation and stores bf16, so
    # compare in f32 against a reference built from bf16-rounded inputs.
    x_q = x.astype(jnp.bfloat16).astype(jnp.float32)
    w_q = weight.astype(jnp.bfloat16).astype(jnp.float32)
    ref = jax.lax.conv_general_dilated(
        x_q, w_q, window_strides=(1, 1), padding=((1, 1), (1, 1)),
        dimension_numbers=("NCHW", "OIHW", "NCHW"),
        precision=jax.lax.Precision.HIGHEST)
    ref = jnp.maximum(ref + bias.reshape(1, Cout, 1, 1), 0.0)

    assert y.shape == (N, Cout, H, W)
    err = float(jnp.max(jnp.abs(y.astype(jnp.float32) - ref)))
    assert jnp.allclose(y.astype(jnp.float32), ref, atol=2e-2, rtol=2e-2), \
        f"mismatch vs reference (max abs err {err})"
    print("KERNEL_OK")
</pallas_src>

<mosaic_0001>
module attributes {stable_mosaic.version = 11 : i64} {
  func.func @_conv_bias_relu_kernel(%arg0: i32, %arg1: i32, %arg2: memref<1x256x36xbf16, #tpu.memory_space<vmem>>, %arg3: memref<1x36x128xbf16, #tpu.memory_space<vmem>>, %arg4: memref<1x128xf32, #tpu.memory_space<vmem>>, %arg5: memref<1x256x128xbf16, #tpu.memory_space<vmem>>) attributes {dimension_semantics = [#tpu.dimension_semantics<parallel>, #tpu.dimension_semantics<parallel>], iteration_bounds = array<i64: 2, 1>, scalar_prefetch = 0 : i64, scratch_operands = 0 : i64, tpu.core_type = #tpu.core_type<tc>, window_params = [{transform_indices = @transform_0, window_bounds = array<i64: 1, 256, 36>}, {pipeline_mode = #tpu.pipeline_mode<synchronous>, transform_indices = @transform_1, window_bounds = array<i64: 1, 36, 128>}, {pipeline_mode = #tpu.pipeline_mode<synchronous>, transform_indices = @transform_2, window_bounds = array<i64: 1, 128>}, {transform_indices = @transform_3, window_bounds = array<i64: 1, 256, 128>}]} {
    %c0 = arith.constant 0 : index
    %c0_0 = arith.constant 0 : index
    %c0_1 = arith.constant 0 : index
    %0 = vector.load %arg2[%c0, %c0_0, %c0_1] : memref<1x256x36xbf16, #tpu.memory_space<vmem>>, vector<1x256x36xbf16>
    %1 = vector.shape_cast %0 : vector<1x256x36xbf16> to vector<256x36xbf16>
    %c0_2 = arith.constant 0 : index
    %c0_3 = arith.constant 0 : index
    %c0_4 = arith.constant 0 : index
    %2 = vector.load %arg3[%c0_2, %c0_3, %c0_4] : memref<1x36x128xbf16, #tpu.memory_space<vmem>>, vector<1x36x128xbf16>
    %3 = vector.shape_cast %2 : vector<1x36x128xbf16> to vector<36x128xbf16>
    %cst = arith.constant dense<0.000000e+00> : vector<256x128xf32>
    %4 = tpu.matmul %1, %3, %cst {dimension_numbers = #tpu.dot_dimension_numbers<[1], [0], [0], [1], [0, 0, 1, 1], [], []>} : vector<256x36xbf16>, vector<36x128xbf16>, vector<256x128xf32> -> vector<256x128xf32>
    %c0_5 = arith.constant 0 : index
    %c0_6 = arith.constant 0 : index
    %5 = vector.load %arg4[%c0_5, %c0_6] : memref<1x128xf32, #tpu.memory_space<vmem>>, vector<1x128xf32>
    %6 = vector.broadcast %5 : vector<1x128xf32> to vector<256x128xf32>
    %7 = arith.addf %4, %6 : vector<256x128xf32>
    %cst_7 = arith.constant 0.000000e+00 : f32
    %8 = vector.broadcast %cst_7 : f32 to vector<256x128xf32>
    %9 = arith.maximumf %7, %8 : vector<256x128xf32>
    %10 = arith.truncf %9 : vector<256x128xf32> to vector<256x128xbf16>
    %c0_8 = arith.constant 0 : index
    %c0_9 = arith.constant 0 : index
    %c0_10 = arith.constant 0 : index
    %11 = vector.load %arg5[%c0_8, %c0_9, %c0_10] : memref<1x256x128xbf16, #tpu.memory_space<vmem>>, vector<1x256x128xbf16>
    %12 = vector.shape_cast %11 : vector<1x256x128xbf16> to vector<256x128xbf16>
    %13 = vector.shape_cast %10 : vector<256x128xbf16> to vector<1x256x128xbf16>
    tpu.vector_store %arg5[%c0_8, %c0_9, %c0_10], %13 {strides = array<i32>} : memref<1x256x128xbf16, #tpu.memory_space<vmem>>, vector<1x256x128xbf16>,
    return
  }
  func.func @transform_0(%arg0: i32, %arg1: i32) -> (i32, i32, i32) {
    %c0_i32 = arith.constant 0 : i32
    %c0_i32_0 = arith.constant 0 : i32
    return %arg0, %arg1, %c0_i32 : i32, i32, i32
  }
  func.func @transform_1(%arg0: i32, %arg1: i32) -> (i32, i32, i32) {
    %c0_i32 = arith.constant 0 : i32
    %c0_i32_0 = arith.constant 0 : i32
    %c0_i32_1 = arith.constant 0 : i32
    %c0_i32_2 = arith.constant 0 : i32
    return %c0_i32, %c0_i32_0, %c0_i32_1 : i32, i32, i32
  }
  func.func @transform_2(%arg0: i32, %arg1: i32) -> (i32, i32) {
    %c0_i32 = arith.constant 0 : i32
    %c0_i32_0 = arith.constant 0 : i32
    %c0_i32_1 = arith.constant 0 : i32
    return %c0_i32, %c0_i32_0 : i32, i32
  }
  func.func @transform_3(%arg0: i32, %arg1: i32) -> (i32, i32, i32) {
    %c0_i32 = arith.constant 0 : i32
    %c0_i32_0 = arith.constant 0 : i32
    return %arg0, %arg1, %c0_i32 : i32, i32, i32
  }
}

module attributes {stable_mosaic.version = 11 : i64} {
  func.func @_conv_bias_relu_kernel(%arg0: i32, %arg1: i32, %arg2: memref<1x256x36xbf16, #tpu.memory_space<vmem>>, %arg3: memref<1x36x128xbf16, #tpu.memory_space<vmem>>, %arg4: memref<1x128xf32, #tpu.memory_space<vmem>>, %arg5: memref<1x256x128xbf16, #tpu.memory_space<vmem>>) attributes {dimension_semantics = [#tpu.dimension_semantics<parallel>, #tpu.dimension_semantics<parallel>], iteration_bounds = array<i64: 2, 1>, scalar_prefetch = 0 : i64, scratch_operands = 0 : i64, tpu.core_type = #tpu.core_type<tc>, window_params = [{transform_indices = @transform_0, window_bounds = array<i64: 1, 256, 36>}, {pipeline_mode = #tpu.pipeline_mode<synchronous>, transform_indices = @transform_1, window_bounds = array<i64: 1, 36, 128>}, {pipeline_mode = #tpu.pipeline_mode<synchronous>, transform_indices = @transform_2, window_bounds = array<i64: 1, 128>}, {transform_indices = @transform_3, window_bounds = array<i64: 1, 256, 128>}]} {
    %c0 = arith.constant 0 : index
    %c0_0 = arith.constant 0 : index
    %c0_1 = arith.constant 0 : index
    %0 = vector.load %arg2[%c0, %c0_0, %c0_1] : memref<1x256x36xbf16, #tpu.memory_space<vmem>>, vector<1x256x36xbf16>
    %1 = vector.shape_cast %0 : vector<1x256x36xbf16> to vector<256x36xbf16>
    %c0_2 = arith.constant 0 : index
    %c0_3 = arith.constant 0 : index
    %c0_4 = arith.constant 0 : index
    %2 = vector.load %arg3[%c0_2, %c0_3, %c0_4] : memref<1x36x128xbf16, #tpu.memory_space<vmem>>, vector<1x36x128xbf16>
    %3 = vector.shape_cast %2 : vector<1x36x128xbf16> to vector<36x128xbf16>
    %cst = arith.constant dense<0.000000e+00> : vector<256x128xf32>
    %4 = tpu.matmul %1, %3, %cst {dimension_numbers = #tpu.dot_dimension_numbers<[1], [0], [0], [1], [0, 0, 1, 1], [], []>} : vector<256x36xbf16>, vector<36x128xbf16>, vector<256x128xf32> -> vector<256x128xf32>
    %c0_5 = arith.constant 0 : index
    %c0_6 = arith.constant 0 : index
    %5 = vector.load %arg4[%c0_5, %c0_6] : memref<1x128xf32, #tpu.memory_space<vmem>>, vector<1x128xf32>
    %6 = vector.broadcast %5 : vector<1x128xf32> to vector<256x128xf32>
    %7 = arith.addf %4, %6 : vector<256x128xf32>
    %cst_7 = arith.constant 0.000000e+00 : f32
    %8 = vector.broadcast %cst_7 : f32 to vector<256x128xf32>
    %9 = arith.maximumf %7, %8 : vector<256x128xf32>
    %10 = arith.truncf %9 : vector<256x128xf32> to vector<256x128xbf16>
    %c0_8 = arith.constant 0 : index
    %c0_9 = arith.constant 0 : index
    %c0_10 = arith.constant 0 : index
    %11 = vector.load %arg5[%c0_8, %c0_9, %c0_10] : memref<1x256x128xbf16, #tpu.memory_space<vmem>>, vector<1x256x128xbf16>
    %12 = vector.shape_cast %11 : vector<1x256x128xbf16> to vector<256x128xbf16>
    %13 = vector.shape_cast %10 : vector<256x128xbf16> to vector<1x256x128xbf16>
    tpu.vector_store %arg5[%c0_8, %c0_9, %c0_10], %13 {strides = array<i32>} : memref<1x256x128xbf16, #tpu.memory_space<vmem>>, vector<1x256x128xbf16>,
    return
  }
  func.func @transform_0(%arg0: i32, %arg1: i32) -> (i32, i32, i32) {
    %c0_i32 = arith.constant 0 : i32
    %c0_i32_0 = arith.constant 0 : i32
    return %arg0, %arg1, %c0_i32 : i32, i32, i32
  }
  func.func @transform_1(%arg0: i32, %arg1: i32) -> (i32, i32, i32) {
    %c0_i32 = arith.constant 0 : i32
    %c0_i32_0 = arith.constant 0 : i32
    %c0_i32_1 = arith.constant 0 : i32
    %c0_i32_2 = arith.constant 0 : i32
    return %c0_i32, %c0_i32_0, %c0_i32_1 : i32, i32, i32
  }
  func.func @transform_2(%arg0: i32, %arg1: i32) -> (i32, i32) {
    %c0_i32 = arith.constant 0 : i32
    %c0_i32_0 = arith.constant 0 : i32
    %c0_i32_1 = arith.constant 0 : i32
    return %c0_i32, %c0_i32_0 : i32, i32
  }
  func.func @transform_3(%arg0: i32, %arg1: i32) -> (i32, i32, i32) {
    %c0_i32 = arith.constant 0 : i32
    %c0_i32_0 = arith.constant 0 : i32
    return %arg0, %arg1, %c0_i32 : i32, i32, i32
  }
}

</mosaic_0001>

<llo_original>
// kernel: conv_module_forward.1
$region0: #{conv_module_forward.1}
  #allocation0 [shape = 'u32[]', space=smem, size = 0x4, offset = 0x4, fixed_abs, tag = 'smem constant byte address 0x4 - core index']
  #allocation1 [shape = 'u32[144,128]{1,0:T(1,128)}', space=vmem, size = 0x12000, scoped, tag = 'internal scratch']
  %s0 = inlined_call_operand.vmem [shape: bf16[2,256,36], index: 0, kind: input, shape index: {}]
  %s1 = inlined_call_operand.vmem [shape: bf16[1,36,128], index: 1, kind: input, shape index: {}]
  %s2 = inlined_call_operand.vmem [shape: f32[1,128], index: 2, kind: input, shape index: {}]
  %s3 = inlined_call_operand.vmem [shape: bf16[2,256,128], index: 3, kind: output, shape index: {}]
  %s4 = sld [smem:[#allocation0]]
  $region45: #{conv_module_forward.1} parent=0
    _
  %s6 = ssub.s32 1, %s4
  %s7 = scalar_select 0, %s6, %s4
  loop: start=0, step=1, limit=4
  $region2: #{conv_module_forward.1} parent=0 // loop_pre_header
    _
  $region3: #{conv_module_forward.1} parent=0 // loop_header
    %s9 = sphi 0, %s13
    %p10 = scmp.ge.s32.totalorder %s9, 4
    %s16 = sphi 0, %s28
    %s17 = sphi 0, %s24
    %s18 = sphi 0, %s16
    %s19 = sphi 0, %s17
    %s20 = sphi 0, %s18
    %s21 = sphi 0, %s19
    %s33 = sphi 0, %s35
    %s36 = sphi 0, %s33
    %s37 = sphi 0, %s36
    %s53 = sphi 0, %s37
    %s57 = sphi 0, %s57
    %s59 = sphi 0, %s57
    %s60 = sphi 0, %s59
    %s74 = sphi 0, %s60
    %s78 = sphi 0, %s78
    %s80 = sphi 0, %s78
    %s81 = sphi 0, %s80
    %s95 = sphi 0, %s81
    %s103 = sphi 0, %s105
    %s106 = sphi 0, %s103
    %s107 = sphi 0, %s106
    %s123 = sphi 0, %s107
  $region4: #{conv_module_forward.1} parent=0 // loop_header_branch
    %12 = sbr.rel (%p10) target = $region8
  $region5: #{conv_module_forward.1} parent=0 // loop_body
    %s14 = ssub.s32 %s9, 1
    %s15 = ssub.s32 %s9, 2
    %s22 = sadd.s32 1, %s17
    %p23 = scmp.ge.s32.totalorder %s22, 1
    %s24 = scalar_select %p23, 0, %s22
    %s25 = sadd.s32 1, %s16
    %s26 = scalar_select %p23, %s25, %s16
    %p27 = scmp.ge.s32.totalorder %s26, 2
    %s28 = scalar_select %p27, 0, %s26
    %s29 = ssub.s32 %s16, %s28
    %s30 = ssub.s32 %s17, %s24
    %s31 = sor.u32 %s29, %s30
    %p32 = scmp.eq.s32.totalorder %s31, 0
    %s34 = sadd.s32 %s33, 1
    %s35 = scalar_select %p32, %s33, %s34
    %p38 = pneg %p32
    %p39 = scmp.eq.s32.totalorder %s9, 1
    %p40 = por %p38, %p39
    %p41 = scmp.ne.s32.totalorder %s33, %s36
    %p42 = scmp.eq.s32.totalorder %s9, 0
    %p43 = por %p41, %p42
    %p44 = scmp.ne.s32.totalorder %s33, %s36
    %p45 = scmp.eq.s32.totalorder %s14, 1
    %p46 = por %p44, %p45
    %p47 = scmp.ne.s32.totalorder %s36, %s37
    %p48 = scmp.eq.s32.totalorder %s14, 0
    %p49 = por %p47, %p48
    %p50 = scmp.ne.s32.totalorder %s36, %s37
    %p51 = scmp.eq.s32.totalorder %s15, 1
    %p52 = por %p50, %p51
    %p54 = scmp.ne.s32.totalorder %s37, %s53
    %p55 = scmp.eq.s32.totalorder %s15, 0
    %p56 = por %p54, %p55
    %s58 = sadd.s32 %s57, 1
    %p61 = scmp.eq.s32.totalorder %s9, 1
    %p62 = scmp.ne.s32.totalorder %s57, %s59
    %p63 = scmp.eq.s32.totalorder %s9, 0
    %p64 = por %p62, %p63
    %p65 = scmp.ne.s32.totalorder %s57, %s59
    %p66 = scmp.eq.s32.totalorder %s14, 1
    %p67 = por %p65, %p66
    %p68 = scmp.ne.s32.totalorder %s59, %s60
    %p69 = scmp.eq.s32.totalorder %s14, 0
    %p70 = por %p68, %p69
    %p71 = scmp.ne.s32.totalorder %s59, %s60
    %p72 = scmp.eq.s32.totalorder %s15, 1
    %p73 = por %p71, %p72
    %p75 = scmp.ne.s32.totalorder %s60, %s74
    %p76 = scmp.eq.s32.totalorder %s15, 0
    %p77 = por %p75, %p76
    %s79 = sadd.s32 %s78, 1
    %p82 = scmp.eq.s32.totalorder %s9, 1
    %p83 = scmp.ne.s32.totalorder %s78, %s80
    %p84 = scmp.eq.s32.totalorder %s9, 0
    %p85 = por %p83, %p84
    %p86 = scmp.ne.s32.totalorder %s78, %s80
    %p87 = scmp.eq.s32.totalorder %s14, 1
    %p88 = por %p86, %p87
    %p89 = scmp.ne.s32.totalorder %s80, %s81
    %p90 = scmp.eq.s32.totalorder %s14, 0
    %p91 = por %p89, %p90
    %p92 = scmp.ne.s32.totalorder %s80, %s81
    %p93 = scmp.eq.s32.totalorder %s15, 1
    %p94 = por %p92, %p93
    %p96 = scmp.ne.s32.totalorder %s81, %s95
    %p97 = scmp.eq.s32.totalorder %s15, 0
    %p98 = por %p96, %p97
    %s99 = ssub.s32 %s16, %s28
    %s100 = ssub.s32 %s17, %s24
    %s101 = sor.u32 %s99, %s100
    %p102 = scmp.eq.s32.totalorder %s101, 0
    %s104 = sadd.s32 %s103, 1
    %s105 = scalar_select %p102, %s103, %s104
    %p108 = pneg %p102
    %p109 = scmp.eq.s32.totalorder %s9, 1
    %p110 = por %p108, %p109
    %p111 = scmp.ne.s32.totalorder %s103, %s106
    %p112 = scmp.eq.s32.totalorder %s9, 0
    %p113 = por %p111, %p112
    %p114 = scmp.ne.s32.totalorder %s103, %s106
    %p115 = scmp.eq.s32.totalorder %s14, 1
    %p116 = por %p114, %p115
    %p117 = scmp.ne.s32.totalorder %s106, %s107
    %p118 = scmp.eq.s32.totalorder %s14, 0
    %p119 = por %p117, %p118
    %p120 = scmp.ne.s32.totalorder %s106, %s107
    %p121 = scmp.eq.s32.totalorder %s15, 1
    %p122 = por %p120, %p121
    %p124 = scmp.ne.s32.totalorder %s107, %s123
    %p125 = scmp.eq.s32.totalorder %s15, 0
    %p126 = por %p124, %p125
    %p127 = scmp.le.s32.totalorder 1, %s9
    %p128 = scmp.lt.s32.totalorder %s9, 3
    %p129 = pnand %p127, %p128
    %p130 = pneg %p129
    // Predicated region
    $region9: #{conv_module_forward.1} parent=5 // pred_check
      _
    $region10: #{conv_module_forward.1} parent=5 // pred_check_branch
      %132 = sbr.rel (%p129) target = $region12
    $region11: #{conv_module_forward.1} parent=5 // pred_region
      %s133 = ssub.s32 %s9, 1
      // Predicated region
      $region13: #{conv_module_forward.1} parent=11 // pred_check
        %p134 = pneg %p70
      $region14: #{conv_module_forward.1} parent=11 // pred_check_branch
        %136 = sbr.rel (%p134) target = $region16
      $region15: #{conv_module_forward.1} parent=11 // pred_region
        _
      $region16: #{conv_module_forward.1} parent=11 // pred_fallthru
        _
      // Predicated region
      $region17: #{conv_module_forward.1} parent=11 // pred_check
        %p137 = pneg %p91
      $region18: #{conv_module_forward.1} parent=11 // pred_check_branch
        %139 = sbr.rel (%p137) target = $region20
      $region19: #{conv_module_forward.1} parent=11 // pred_region
        _
      $region20: #{conv_module_forward.1} parent=11 // pred_fallthru
        _
    $region12: #{conv_module_forward.1} parent=5 // pred_fallthru
      _
    %p140 = scmp.lt.s32.totalorder %s9, 2
    // Predicated region
    $region21: #{conv_module_forward.1} parent=5 // pred_check
      %p141 = pneg %p140
    $region22: #{conv_module_forward.1} parent=5 // pred_check_branch
      %143 = sbr.rel (%p141) target = $region24
    $region23: #{conv_module_forward.1} parent=5 // pred_region
      // Predicated region
      $region25: #{conv_module_forward.1} parent=23 // pred_check
        %p144 = pneg %p43
      $region26: #{conv_module_forward.1} parent=23 // pred_check_branch
        %146 = sbr.rel (%p144) target = $region28
      $region27: #{conv_module_forward.1} parent=23 // pred_region
        %s147 = smul.u32 32, %s17
        %p148 = scmp.lt.s32.totalorder %s16, 1
        %s149 = scalar_select %p148, %s16, 1
        %p150 = scmp.lt.s32.totalorder %s147, 31
        %s151 = scalar_select %p150, %s147, 31
        %s152 = smul.addr %s149, 32
        %s153 = sadd.s32 %s151, %s152
        %s154 = smul.addr %s153, 4
        %s155 = scalar_lea.vmem %s0, %s154
        %s156 = smul.u32 32, %s17
      $region28: #{conv_module_forward.1} parent=23 // pred_fallthru
        _
    $region24: #{conv_module_forward.1} parent=5 // pred_fallthru
      _
    %p157 = scmp.le.s32.totalorder 1, %s9
    %p158 = scmp.lt.s32.totalorder %s9, 3
    %p159 = pnand %p157, %p158
    %p160 = pneg %p159
    // Predicated region
    $region29: #{conv_module_forward.1} parent=5 // pred_check
      _
    $region30: #{conv_module_forward.1} parent=5 // pred_check_branch
      %162 = sbr.rel (%p159) target = $region32
    $region31: #{conv_module_forward.1} parent=5 // pred_region
      %s163 = ssub.s32 %s9, 1
      %s164 = smul.u32 32, %s19
      %p165 = scmp.lt.s32.totalorder %s18, 1
      %s166 = scalar_select %p165, %s18, 1
      %p167 = scmp.lt.s32.totalorder %s164, 31
      %s168 = scalar_select %p167, %s164, 31
      %s169 = smul.addr %s166, 32
      %s170 = sadd.s32 %s168, %s169
      %s171 = smul.addr %s170, 4
      %s172 = scalar_lea.vmem %s0, %s171
      %p173 = pneg %p49
      %p174 = pneg %p46
      %p175 = pneg %p70
      %p176 = pneg %p67
      %p177 = pneg %p91
      %p178 = pneg %p88
      %p179 = pneg %p119
      %p180 = pneg %p116
      %s181 = smul.u32 32, %s19
      %p182 = scmp.lt.s32.totalorder %s18, 1
      %s183 = scalar_select %p182, %s18, 1
      %p184 = scmp.lt.s32.totalorder %s181, 31
      %s185 = scalar_select %p184, %s181, 31
      %s186 = smul.addr %s183, 32
      %s187 = sadd.s32 %s185, %s186
      %s188 = smul.addr %s187, 4
      %s189 = scalar_lea.vmem %s3, %s188
      %s190 = smul.u32 32, %s19
      %p191 = scmp.lt.s32.totalorder %s18, 1
      %s192 = scalar_select %p191, %s18, 1
      %p193 = scmp.lt.s32.totalorder %s190, 31
      %s194 = scalar_select %p193, %s190, 31
      %s195 = smul.addr %s192, 32
      %s196 = sadd.s32 %s194, %s195
      %s197 = smul.addr %s196, 4
      %s198 = scalar_lea.vmem %s0, %s197
      %s199 = smul.u32 32, %s19
      %s200 = smul.u32 32, %s19
      %p201 = scmp.lt.s32.totalorder %s18, 1
      %s202 = scalar_select %p201, %s18, 1
      %p203 = scmp.lt.s32.totalorder %s200, 31
      %s204 = scalar_select %p203, %s200, 31
      %s205 = smul.addr %s202, 32
      %s206 = sadd.s32 %s204, %s205
      %s207 = smul.addr %s206, 4
      %s208 = scalar_lea.vmem %s3, %s207
      %s209 = smul.u32 32, %s19
      %v211 = vld [vmem:[%s198] sm:$0xf]
      %v212 = vld [vmem:[%s198 + $0x4] sm:$0xf]
      %v213 = vld [vmem:[%s198 + $0x8] sm:$0xf]
      %v214 = vld [vmem:[%s198 + $0xc] sm:$0xf]
      %v215 = vld [vmem:[%s198 + $0x10] sm:$0xf]
      %v216 = vld [vmem:[%s198 + $0x14] sm:$0xf]
      %v217 = vld [vmem:[%s198 + $0x18] sm:$0xf]
      %v218 = vld [vmem:[%s198 + $0x1c] sm:$0xf]
      %v219 = vld [vmem:[%s198 + $0x20] sm:$0xf]
      %v220 = vld [vmem:[%s198 + $0x24] sm:$0xf]
      %v221 = vld [vmem:[%s198 + $0x28] sm:$0xf]
      %v222 = vld [vmem:[%s198 + $0x2c] sm:$0xf]
      %v223 = vld [vmem:[%s198 + $0x30] sm:$0xf]
      %v224 = vld [vmem:[%s198 + $0x34] sm:$0xf]
      %v225 = vld [vmem:[%s198 + $0x38] sm:$0xf]
      %v226 = vld [vmem:[%s198 + $0x3c] sm:$0xf]
      %v227 = vld [vmem:[%s198 + $0x40] sm:$0xf]
      %v228 = vld [vmem:[%s198 + $0x44] sm:$0xf]
      %v229 = vld [vmem:[%s198 + $0x48] sm:$0xf]
      %v230 = vld [vmem:[%s198 + $0x4c] sm:$0xf]
      %v231 = vld [vmem:[%s198 + $0x50] sm:$0xf]
      %v232 = vld [vmem:[%s198 + $0x54] sm:$0xf]
      %v233 = vld [vmem:[%s198 + $0x58] sm:$0xf]
      %v234 = vld [vmem:[%s198 + $0x5c] sm:$0xf]
      %v235 = vld [vmem:[%s198 + $0x60] sm:$0xf]
      %v236 = vld [vmem:[%s198 + $0x64] sm:$0xf]
      %v237 = vld [vmem:[%s198 + $0x68] sm:$0xf]
      %v238 = vld [vmem:[%s198 + $0x6c] sm:$0xf]
      %v239 = vld [vmem:[%s198 + $0x70] sm:$0xf]
      %v240 = vld [vmem:[%s198 + $0x74] sm:$0xf]
      %v241 = vld [vmem:[%s198 + $0x78] sm:$0xf]
      %v242 = vld [vmem:[%s198 + $0x7c] sm:$0xf]
      %v243 = vld [vmem:[%s1] sm:$0xf]
      %v244 = vld [vmem:[%s1 + $0x4] sm:$0xf]
      %v245 = vld [vmem:[%s1 + $0x8] sm:$0xf]
      %v246 = vld [vmem:[%s1 + $0xc] sm:$0xf]
      %v247 = vld [vmem:[%s1 + $0x10] sm:$0x3]
      %v248 = vld [vmem:[%s2] sm:$0x1]
      %v250 = vlaneseq
      %v251 = vshrl.u32 %v250, 7
      %v252 = vsub.s32 0, %v251
      %v253 = vrot.slane %v248, %v252
      %v287 = vunpack.c.l.b16 %v211
      %v288 = vunpack.c.l.b16 %v212
      %v289 = vunpack.c.l.b16 %v213
      %v290 = vunpack.c.l.b16 %v214
      %v291 = vunpack.c.l.b16 %v215
      %v292 = vunpack.c.l.b16 %v216
      %v293 = vunpack.c.l.b16 %v217
      %v294 = vunpack.c.l.b16 %v218
      %v295 = vunpack.c.l.b16 %v219
      %v296 = vunpack.c.l.b16 %v220
      %v297 = vunpack.c.l.b16 %v221
      %v298 = vunpack.c.l.b16 %v222
      %v299 = vunpack.c.l.b16 %v223
      %v300 = vunpack.c.l.b16 %v224
      %v301 = vunpack.c.l.b16 %v225
      %v302 = vunpack.c.l.b16 %v226
      %v303 = vunpack.c.l.b16 %v227
      %v304 = vunpack.c.l.b16 %v228
      %v305 = vunpack.c.l.b16 %v229
      %v306 = vunpack.c.l.b16 %v230
      %v307 = vunpack.c.l.b16 %v231
      %v308 = vunpack.c.l.b16 %v232
      %v309 = vunpack.c.l.b16 %v233
      %v310 = vunpack.c.l.b16 %v234
      %v311 = vunpack.c.l.b16 %v235
      %v312 = vunpack.c.l.b16 %v236
      %v313 = vunpack.c.l.b16 %v237
      %v314 = vunpack.c.l.b16 %v238
      %v315 = vunpack.c.l.b16 %v239
      %v316 = vunpack.c.l.b16 %v240
      %v317 = vunpack.c.l.b16 %v241
      %v318 = vunpack.c.l.b16 %v242
      %v319 = vpack.c.b16 %v288, %v287
      %v320 = vpack.c.b16 %v290, %v289
      %v321 = vpack.c.b16 %v292, %v291
      %v322 = vpack.c.b16 %v294, %v293
      %v323 = vpack.c.b16 %v296, %v295
      %v324 = vpack.c.b16 %v298, %v297
      %v325 = vpack.c.b16 %v300, %v299
      %v326 = vpack.c.b16 %v302, %v301
      %v327 = vpack.c.b16 %v304, %v303
      %v328 = vpack.c.b16 %v306, %v305
      %v329 = vpack.c.b16 %v308, %v307
      %v330 = vpack.c.b16 %v310, %v309
      %v331 = vpack.c.b16 %v312, %v311
      %v332 = vpack.c.b16 %v314, %v313
      %v333 = vpack.c.b16 %v316, %v315
      %v334 = vpack.c.b16 %v318, %v317
      %v340 = vunpack.c.l.b16 %v243
      %v341 = vunpack.c.l.b16 %v244
      %v342 = vunpack.c.l.b16 %v245
      %v343 = vunpack.c.l.b16 %v246
      %v344 = vunpack.c.l.b16 %v247
      %v345 = vpack.c.b16 %v341, %v340
      %v346 = vpack.c.b16 %v343, %v342
      %v347 = vpack.c.b16 %v344, %v344
      %vm350 = vcmask 293888
      %v352 = vsel %vm350, %v319, 0
      %v355 = vsel %vm350, %v320, 0
      %v358 = vsel %vm350, %v321, 0
      %v361 = vsel %vm350, %v322, 0
      %v364 = vsel %vm350, %v323, 0
      %v367 = vsel %vm350, %v324, 0
      %v370 = vsel %vm350, %v325, 0
      %v373 = vsel %vm350, %v326, 0
      %v376 = vsel %vm350, %v327, 0
      %v379 = vsel %vm350, %v328, 0
      %v382 = vsel %vm350, %v329, 0
      %v385 = vsel %vm350, %v330, 0
      %v388 = vsel %vm350, %v331, 0
      %v391 = vsel %vm350, %v332, 0
      %v394 = vsel %vm350, %v333, 0
      %v397 = vsel %vm350, %v334, 0
      %vm399 = vcmask 1041408
      %v401 = vsel %vm399, %v347, 0
      %403 = vmatprep.subr.bf16.mxu0 0
      %404 = vmatpush1.bf16.msra.mxu0 %v345
      %405 = vmatprep.subr.bf16.mxu0 0
      %406 = vmatpush1.bf16.msra.mxu0 %v346
      %407 = vmatprep.subr.bf16.mxu0 0
      %408 = vmatpush1.bf16.msra.mxu0 %v401
      %409 = vmatprep.subr.bf16.mxu0 0
      %410 = vmatpush1.bf16.msra.mxu0 0
      %411 = vmatprep.subr.bf16.mxu0 0
      %412 = vmatpush1.bf16.msra.mxu0 0
      %413 = vmatprep.subr.bf16.mxu0 0
      %414 = vmatpush1.bf16.msra.mxu0 0
      %415 = vmatprep.subr.bf16.mxu0 0
      %416 = vmatpush1.bf16.msra.mxu0 0
      %417 = vmatprep.subr.bf16.mxu0 0
      %418 = vmatpush1.bf16.msra.mxu0 0
      %419 = vmatprep.subr.bf16.mxu0 0
      %420 = vmatpush1.bf16.msra.mxu0 0
      %421 = vmatprep.subr.bf16.mxu0 0
      %422 = vmatpush1.bf16.msra.mxu0 0
      %423 = vmatprep.subr.bf16.mxu0 0
      %424 = vmatpush1.bf16.msra.mxu0 0
      %425 = vmatprep.subr.bf16.mxu0 0
      %426 = vmatpush1.bf16.msra.mxu0 0
      %427 = vmatprep.subr.bf16.mxu0 0
      %428 = vmatpush1.bf16.msra.mxu0 0
      %429 = vmatprep.subr.bf16.mxu0 0
      %430 = vmatpush1.bf16.msra.mxu0 0
      %431 = vmatprep.subr.bf16.mxu0 0
      %432 = vmatpush1.bf16.msra.mxu0 0
      %433 = vmatprep.subr.bf16.mxu0 0
      %434 = vmatpush1.bf16.msra.mxu0 0
      %435 = vmatprep.mubr.bf16.mxu0 0
      %436 = vmatmul.mubr.bf16.gmra.mrb[0].mxu0 %v352
      %v437 = vpop.f32.mrb[0].mxu0
      %v438 = vadd.f32 %v253, %v437
      %v439 = vpop.f32.mrb[0].mxu0
      %v440 = vpop.f32.mrb[0].mxu0
      %v441 = vadd.f32 %v253, %v440
      %v442 = vpop.f32.mrb[0].mxu0
      %443 = vmatprep.mubr.bf16.mxu0 0
      %444 = vmatmul.mubr.bf16.gmra.mrb[0].mxu0 %v355
      %v445 = vpop.f32.mrb[0].mxu0
      %v446 = vadd.f32 %v253, %v445
      %v447 = vpop.f32.mrb[0].mxu0
      %v448 = vpop.f32.mrb[0].mxu0
      %v449 = vadd.f32 %v253, %v448
      %v450 = vpop.f32.mrb[0].mxu0
      %451 = vmatprep.mubr.bf16.mxu0 0
      %452 = vmatmul.mubr.bf16.gmra.mrb[0].mxu0 %v358
      %v453 = vpop.f32.mrb[0].mxu0
      %v454 = vadd.f32 %v253, %v453
      %v455 = vpop.f32.mrb[0].mxu0
      %v456 = vpop.f32.mrb[0].mxu0
      %v457 = vadd.f32 %v253, %v456
      %v458 = vpop.f32.mrb[0].mxu0
      %459 = vmatprep.mubr.bf16.mxu0 0
      %460 = vmatmul.mubr.bf16.gmra.mrb[0].mxu0 %v361
      %v461 = vpop.f32.mrb[0].mxu0
      %v462 = vadd.f32 %v253, %v461
      %v463 = vpop.f32.mrb[0].mxu0
      %v464 = vpop.f32.mrb[0].mxu0
      %v465 = vadd.f32 %v253, %v464
      %v466 = vpop.f32.mrb[0].mxu0
      %467 = vmatprep.mubr.bf16.mxu0 0
      %468 = vmatmul.mubr.bf16.gmra.mrb[0].mxu0 %v364
      %v469 = vpop.f32.mrb[0].mxu0
      %v470 = vadd.f32 %v253, %v469
      %v471 = vpop.f32.mrb[0].mxu0
      %v472 = vpop.f32.mrb[0].mxu0
      %v473 = vadd.f32 %v253, %v472
      %v474 = vpop.f32.mrb[0].mxu0
      %475 = vmatprep.mubr.bf16.mxu0 0
      %476 = vmatmul.mubr.bf16.gmra.mrb[0].mxu0 %v367
      %v477 = vpop.f32.mrb[0].mxu0
      %v478 = vadd.f32 %v253, %v477
      %v479 = vpop.f32.mrb[0].mxu0
      %v480 = vpop.f32.mrb[0].mxu0
      %v481 = vadd.f32 %v253, %v480
      %v482 = vpop.f32.mrb[0].mxu0
      %483 = vmatprep.mubr.bf16.mxu0 0
      %484 = vmatmul.mubr.bf16.gmra.mrb[0].mxu0 %v370
      %v485 = vpop.f32.mrb[0].mxu0
      %v486 = vadd.f32 %v253, %v485
      %v487 = vpop.f32.mrb[0].mxu0
      %v488 = vpop.f32.mrb[0].mxu0
      %v489 = vadd.f32 %v253, %v488
      %v490 = vpop.f32.mrb[0].mxu0
      %491 = vmatprep.mubr.bf16.mxu0 0
      %492 = vmatmul.mubr.bf16.gmra.mrb[0].mxu0 %v373
      %v493 = vpop.f32.mrb[0].mxu0
      %v494 = vadd.f32 %v253, %v493
      %v495 = vpop.f32.mrb[0].mxu0
      %v496 = vpop.f32.mrb[0].mxu0
      %v497 = vadd.f32 %v253, %v496
      %v498 = vpop.f32.mrb[0].mxu0
      %499 = vmatprep.mubr.bf16.mxu0 0
      %500 = vmatmul.mubr.bf16.gmra.mrb[0].mxu0 %v376
      %v501 = vpop.f32.mrb[0].mxu0
      %v502 = vadd.f32 %v253, %v501
      %v503 = vpop.f32.mrb[0].mxu0
      %v504 = vpop.f32.mrb[0].mxu0
      %v505 = vadd.f32 %v253, %v504
      %v506 = vpop.f32.mrb[0].mxu0
      %507 = vmatprep.mubr.bf16.mxu0 0
      %508 = vmatmul.mubr.bf16.gmra.mrb[0].mxu0 %v379
      %v509 = vpop.f32.mrb[0].mxu0
      %v510 = vadd.f32 %v253, %v509
      %v511 = vpop.f32.mrb[0].mxu0
      %v512 = vpop.f32.mrb[0].mxu0
      %v513 = vadd.f32 %v253, %v512
      %v514 = vpop.f32.mrb[0].mxu0
      %515 = vmatprep.mubr.bf16.mxu0 0
      %516 = vmatmul.mubr.bf16.gmra.mrb[0].mxu0 %v382
      %v517 = vpop.f32.mrb[0].mxu0
      %v518 = vadd.f32 %v253, %v517
      %v519 = vpop.f32.mrb[0].mxu0
      %v520 = vpop.f32.mrb[0].mxu0
      %v521 = vadd.f32 %v253, %v520
      %v522 = vpop.f32.mrb[0].mxu0
      %523 = vmatprep.mubr.bf16.mxu0 0
      %524 = vmatmul.mubr.bf16.gmra.mrb[0].mxu0 %v385
      %v525 = vpop.f32.mrb[0].mxu0
      %v526 = vadd.f32 %v253, %v525
      %v527 = vpop.f32.mrb[0].mxu0
      %v528 = vpop.f32.mrb[0].mxu0
      %v529 = vadd.f32 %v253, %v528
      %v530 = vpop.f32.mrb[0].mxu0
      %531 = vmatprep.mubr.bf16.mxu0 0
      %532 = vmatmul.mubr.bf16.gmra.mrb[0].mxu0 %v388
      %v533 = vpop.f32.mrb[0].mxu0
      %v534 = vadd.f32 %v253, %v533
      %v535 = vpop.f32.mrb[0].mxu0
      %v536 = vpop.f32.mrb[0].mxu0
      %v537 = vadd.f32 %v253, %v536
      %v538 = vpop.f32.mrb[0].mxu0
      %539 = vmatprep.mubr.bf16.mxu0 0
      %540 = vmatmul.mubr.bf16.gmra.mrb[0].mxu0 %v391
      %v541 = vpop.f32.mrb[0].mxu0
      %v542 = vadd.f32 %v253, %v541
      %v543 = vpop.f32.mrb[0].mxu0
      %v544 = vpop.f32.mrb[0].mxu0
      %v545 = vadd.f32 %v253, %v544
      %v546 = vpop.f32.mrb[0].mxu0
      %547 = vmatprep.mubr.bf16.mxu0 0
      %548 = vmatmul.mubr.bf16.gmra.mrb[0].mxu0 %v394
      %v549 = vpop.f32.mrb[0].mxu0
      %v550 = vadd.f32 %v253, %v549
      %v551 = vpop.f32.mrb[0].mxu0
      %v552 = vpop.f32.mrb[0].mxu0
      %v553 = vadd.f32 %v253, %v552
      %v554 = vpop.f32.mrb[0].mxu0
      %555 = vmatprep.mubr.bf16.mxu0 0
      %556 = vmatmul.mubr.bf16.gmra.mrb[0].mxu0 %v397
      %v557 = vpop.f32.mrb[0].mxu0
      %v558 = vadd.f32 %v253, %v557
      %v559 = vpop.f32.mrb[0].mxu0
      %v560 = vpop.f32.mrb[0].mxu0
      %v561 = vadd.f32 %v253, %v560
      %v562 = vpop.f32.mrb[0].mxu0
      %563 = vdwg.mxu0
      %v564 = vmax.f32 %v438, 0.0
      %v565 = vmax.f32 %v441, 0.0
      %v566 = vmax.f32 %v446, 0.0
      %v567 = vmax.f32 %v449, 0.0
      %v568 = vmax.f32 %v454, 0.0
      %v569 = vmax.f32 %v457, 0.0
      %v570 = vmax.f32 %v462, 0.0
      %v571 = vmax.f32 %v465, 0.0
      %v572 = vmax.f32 %v470, 0.0
      %v573 = vmax.f32 %v473, 0.0
      %v574 = vmax.f32 %v478, 0.0
      %v575 = vmax.f32 %v481, 0.0
      %v576 = vmax.f32 %v486, 0.0
      %v577 = vmax.f32 %v489, 0.0
      %v578 = vmax.f32 %v494, 0.0
      %v579 = vmax.f32 %v497, 0.0
      %v580 = vmax.f32 %v502, 0.0
      %v581 = vmax.f32 %v505, 0.0
      %v582 = vmax.f32 %v510, 0.0
      %v583 = vmax.f32 %v513, 0.0
      %v584 = vmax.f32 %v518, 0.0
      %v585 = vmax.f32 %v521, 0.0
      %v586 = vmax.f32 %v526, 0.0
      %v587 = vmax.f32 %v529, 0.0
      %v588 = vmax.f32 %v534, 0.0
      %v589 = vmax.f32 %v537, 0.0
      %v590 = vmax.f32 %v542, 0.0
      %v591 = vmax.f32 %v545, 0.0
      %v592 = vmax.f32 %v550, 0.0
      %v593 = vmax.f32 %v553, 0.0
      %v594 = vmax.f32 %v558, 0.0
      %v595 = vmax.f32 %v561, 0.0
      %v596 = vpack.c.bf16 %v565, %v564
      %v597 = vpack.c.bf16 %v567, %v566
      %v598 = vpack.c.bf16 %v569, %v568
      %v599 = vpack.c.bf16 %v571, %v570
      %v600 = vpack.c.bf16 %v573, %v572
      %v601 = vpack.c.bf16 %v575, %v574
      %v602 = vpack.c.bf16 %v577, %v576
      %v603 = vpack.c.bf16 %v579, %v578
      %v604 = vpack.c.bf16 %v581, %v580
      %v605 = vpack.c.bf16 %v583, %v582
      %v606 = vpack.c.bf16 %v585, %v584
      %v607 = vpack.c.bf16 %v587, %v586
      %v608 = vpack.c.bf16 %v589, %v588
      %v609 = vpack.c.bf16 %v591, %v590
      %v610 = vpack.c.bf16 %v593, %v592
      %v611 = vpack.c.bf16 %v595, %v594
      %v628 = vunpack.c.l.b16 %v596
      %v629 = vunpack.c.h.b16 %v596
      %v630 = vunpack.c.l.b16 %v597
      %v631 = vunpack.c.h.b16 %v597
      %v632 = vunpack.c.l.b16 %v598
      %v633 = vunpack.c.h.b16 %v598
      %v634 = vunpack.c.l.b16 %v599
      %v635 = vunpack.c.h.b16 %v599
      %v636 = vunpack.c.l.b16 %v600
      %v637 = vunpack.c.h.b16 %v600
      %v638 = vunpack.c.l.b16 %v601
      %v639 = vunpack.c.h.b16 %v601
      %v640 = vunpack.c.l.b16 %v602
      %v641 = vunpack.c.h.b16 %v602
      %v642 = vunpack.c.l.b16 %v603
      %v643 = vunpack.c.h.b16 %v603
      %v644 = vunpack.c.l.b16 %v604
      %v645 = vunpack.c.h.b16 %v604
      %v646 = vunpack.c.l.b16 %v605
      %v647 = vunpack.c.h.b16 %v605
      %v648 = vunpack.c.l.b16 %v606
      %v649 = vunpack.c.h.b16 %v606
      %v650 = vunpack.c.l.b16 %v607
      %v651 = vunpack.c.h.b16 %v607
      %v652 = vunpack.c.l.b16 %v608
      %v653 = vunpack.c.h.b16 %v608
      %v654 = vunpack.c.l.b16 %v609
      %v655 = vunpack.c.h.b16 %v609
      %v656 = vunpack.c.l.b16 %v610
      %v657 = vunpack.c.h.b16 %v610
      %v658 = vunpack.c.l.b16 %v611
      %v659 = vunpack.c.h.b16 %v611
      %v660 = vpack.c.b16 %v628, %v628
      %v661 = vpack.c.b16 %v629, %v629
      %v662 = vpack.c.b16 %v630, %v630
      %v663 = vpack.c.b16 %v631, %v631
      %v664 = vpack.c.b16 %v632, %v632
      %v665 = vpack.c.b16 %v633, %v633
      %v666 = vpack.c.b16 %v634, %v634
      %v667 = vpack.c.b16 %v635, %v635
      %v668 = vpack.c.b16 %v636, %v636
      %v669 = vpack.c.b16 %v637, %v637
      %v670 = vpack.c.b16 %v638, %v638
      %v671 = vpack.c.b16 %v639, %v639
      %v672 = vpack.c.b16 %v640, %v640
      %v673 = vpack.c.b16 %v641, %v641
      %v674 = vpack.c.b16 %v642, %v642
      %v675 = vpack.c.b16 %v643, %v643
      %v676 = vpack.c.b16 %v644, %v644
      %v677 = vpack.c.b16 %v645, %v645
      %v678 = vpack.c.b16 %v646, %v646
      %v679 = vpack.c.b16 %v647, %v647
      %v680 = vpack.c.b16 %v648, %v648
      %v681 = vpack.c.b16 %v649, %v649
      %v682 = vpack.c.b16 %v650, %v650
      %v683 = vpack.c.b16 %v651, %v651
      %v684 = vpack.c.b16 %v652, %v652
      %v685 = vpack.c.b16 %v653, %v653
      %v686 = vpack.c.b16 %v654, %v654
      %v687 = vpack.c.b16 %v655, %v655
      %v688 = vpack.c.b16 %v656, %v656
      %v689 = vpack.c.b16 %v657, %v657
      %v690 = vpack.c.b16 %v658, %v658
      %v691 = vpack.c.b16 %v659, %v659
      %724 = vst [vmem:[%s208] sm:$0xf] %v660
      %725 = vst [vmem:[%s208 + $0x4] sm:$0xf] %v661
      %726 = vst [vmem:[%s208 + $0x8] sm:$0xf] %v662
      %727 = vst [vmem:[%s208 + $0xc] sm:$0xf] %v663
      %728 = vst [vmem:[%s208 + $0x10] sm:$0xf] %v664
      %729 = vst [vmem:[%s208 + $0x14] sm:$0xf] %v665
      %730 = vst [vmem:[%s208 + $0x18] sm:$0xf] %v666
      %731 = vst [vmem:[%s208 + $0x1c] sm:$0xf] %v667
      %732 = vst [vmem:[%s208 + $0x20] sm:$0xf] %v668
      %733 = vst [vmem:[%s208 + $0x24] sm:$0xf] %v669
      %734 = vst [vmem:[%s208 + $0x28] sm:$0xf] %v670
      %735 = vst [vmem:[%s208 + $0x2c] sm:$0xf] %v671
      %736 = vst [vmem:[%s208 + $0x30] sm:$0xf] %v672
      %737 = vst [vmem:[%s208 + $0x34] sm:$0xf] %v673
      %738 = vst [vmem:[%s208 + $0x38] sm:$0xf] %v674
      %739 = vst [vmem:[%s208 + $0x3c] sm:$0xf] %v675
      %740 = vst [vmem:[%s208 + $0x40] sm:$0xf] %v676
      %741 = vst [vmem:[%s208 + $0x44] sm:$0xf] %v677
      %742 = vst [vmem:[%s208 + $0x48] sm:$0xf] %v678
      %743 = vst [vmem:[%s208 + $0x4c] sm:$0xf] %v679
      %744 = vst [vmem:[%s208 + $0x50] sm:$0xf] %v680
      %745 = vst [vmem:[%s208 + $0x54] sm:$0xf] %v681
      %746 = vst [vmem:[%s208 + $0x58] sm:$0xf] %v682
      %747 = vst [vmem:[%s208 + $0x5c] sm:$0xf] %v683
      %748 = vst [vmem:[%s208 + $0x60] sm:$0xf] %v684
      %749 = vst [vmem:[%s208 + $0x64] sm:$0xf] %v685
      %750 = vst [vmem:[%s208 + $0x68] sm:$0xf] %v686
      %751 = vst [vmem:[%s208 + $0x6c] sm:$0xf] %v687
      %752 = vst [vmem:[%s208 + $0x70] sm:$0xf] %v688
      %753 = vst [vmem:[%s208 + $0x74] sm:$0xf] %v689
      %754 = vst [vmem:[%s208 + $0x78] sm:$0xf] %v690
      %755 = vst [vmem:[%s208 + $0x7c] sm:$0xf] %v691
      %s756 = smul.u32 32, %s19
      %p757 = scmp.lt.s32.totalorder %s18, 1
      %s758 = scalar_select %p757, %s18, 1
      %p759 = scmp.lt.s32.totalorder %s756, 31
      %s760 = scalar_select %p759, %s756, 31
      %s761 = smul.addr %s758, 32
      %s762 = sadd.s32 %s760, %s761
      %s763 = smul.addr %s762, 4
      %s764 = scalar_lea.vmem %s3, %s763
      // Predicated region
      $region33: #{conv_module_forward.1} parent=31 // pred_check
        %p765 = pneg %p116
      $region34: #{conv_module_forward.1} parent=31 // pred_check_branch
        %767 = sbr.rel (%p765) target = $region36
      $region35: #{conv_module_forward.1} parent=31 // pred_region
        %s768 = smul.u32 32, %s19
      $region36: #{conv_module_forward.1} parent=31 // pred_fallthru
        _
    $region32: #{conv_module_forward.1} parent=5 // pred_fallthru
      _
    %p769 = scmp.le.s32.totalorder 2, %s9
    // Predicated region
    $region37: #{conv_module_forward.1} parent=5 // pred_check
      %p770 = pneg %p769
    $region38: #{conv_module_forward.1} parent=5 // pred_check_branch
      %772 = sbr.rel (%p770) target = $region40
    $region39: #{conv_module_forward.1} parent=5 // pred_region
      %s773 = ssub.s32 %s9, 2
      // Predicated region
      $region41: #{conv_module_forward.1} parent=39 // pred_check
        %p774 = pneg %p122
      $region42: #{conv_module_forward.1} parent=39 // pred_check_branch
        %776 = sbr.rel (%p774) target = $region44
      $region43: #{conv_module_forward.1} parent=39 // pred_region
        %s777 = smul.u32 32, %s21
        %p778 = scmp.lt.s32.totalorder %s20, 1
        %s779 = scalar_select %p778, %s20, 1
        %p780 = scmp.lt.s32.totalorder %s777, 31
        %s781 = scalar_select %p780, %s777, 31
        %s782 = smul.addr %s779, 32
        %s783 = sadd.s32 %s781, %s782
        %s784 = smul.addr %s783, 4
        %s785 = scalar_lea.vmem %s3, %s784
      $region44: #{conv_module_forward.1} parent=39 // pred_fallthru
        _
    $region40: #{conv_module_forward.1} parent=5 // pred_fallthru
      _
  $region6: #{conv_module_forward.1} parent=0 // loop_footer
    %s13 = sadd.s32 1, %s9
  $region7: #{conv_module_forward.1} parent=0 // loop_footer_branch
    %8 = sbr.rel target = $region3
  $region8: #{conv_module_forward.1} parent=0 // loop_exit
    _

// kernel: conv_module_forward.1
$region0: #{conv_module_forward.1}
  #allocation0 [shape = 'u32[]', space=smem, size = 0x4, offset = 0x4, fixed_abs, tag = 'smem constant byte address 0x4 - core index']
  #allocation1 [shape = 'u32[144,128]{1,0:T(1,128)}', space=vmem, size = 0x12000, scoped, tag = 'internal scratch']
  %s0 = inlined_call_operand.vmem [shape: bf16[2,256,36], index: 0, kind: input, shape index: {}]
  %s1 = inlined_call_operand.vmem [shape: bf16[1,36,128], index: 1, kind: input, shape index: {}]
  %s2 = inlined_call_operand.vmem [shape: f32[1,128], index: 2, kind: input, shape index: {}]
  %s3 = inlined_call_operand.vmem [shape: bf16[2,256,128], index: 3, kind: output, shape index: {}]
  %s4 = sld [smem:[#allocation0]]
  $region45: #{conv_module_forward.1} parent=0
    _
  %s6 = ssub.s32 1, %s4
  %s7 = scalar_select 0, %s6, %s4
  loop: start=0, step=1, limit=4
  $region2: #{conv_module_forward.1} parent=0 // loop_pre_header
    _
  $region3: #{conv_module_forward.1} parent=0 // loop_header
    %s9 = sphi 0, %s13
    %p10 = scmp.ge.s32.totalorder %s9, 4
    %s16 = sphi 0, %s28
    %s17 = sphi 0, %s24
    %s18 = sphi 0, %s16
    %s19 = sphi 0, %s17
    %s20 = sphi 0, %s18
    %s21 = sphi 0, %s19
    %s33 = sphi 0, %s35
    %s36 = sphi 0, %s33
    %s37 = sphi 0, %s36
    %s53 = sphi 0, %s37
    %s57 = sphi 0, %s57
    %s59 = sphi 0, %s57
    %s60 = sphi 0, %s59
    %s74 = sphi 0, %s60
    %s78 = sphi 0, %s78
    %s80 = sphi 0, %s78
    %s81 = sphi 0, %s80
    %s95 = sphi 0, %s81
    %s103 = sphi 0, %s105
    %s106 = sphi 0, %s103
    %s107 = sphi 0, %s106
    %s123 = sphi 0, %s107
  $region4: #{conv_module_forward.1} parent=0 // loop_header_branch
    %12 = sbr.rel (%p10) target = $region8
  $region5: #{conv_module_forward.1} parent=0 // loop_body
    %s14 = ssub.s32 %s9, 1
    %s15 = ssub.s32 %s9, 2
    %s22 = sadd.s32 1, %s17
    %p23 = scmp.ge.s32.totalorder %s22, 1
    %s24 = scalar_select %p23, 0, %s22
    %s25 = sadd.s32 1, %s16
    %s26 = scalar_select %p23, %s25, %s16
    %p27 = scmp.ge.s32.totalorder %s26, 2
    %s28 = scalar_select %p27, 0, %s26
    %s29 = ssub.s32 %s16, %s28
    %s30 = ssub.s32 %s17, %s24
    %s31 = sor.u32 %s29, %s30
    %p32 = scmp.eq.s32.totalorder %s31, 0
    %s34 = sadd.s32 %s33, 1
    %s35 = scalar_select %p32, %s33, %s34
    %p38 = pneg %p32
    %p39 = scmp.eq.s32.totalorder %s9, 1
    %p40 = por %p38, %p39
    %p41 = scmp.ne.s32.totalorder %s33, %s36
    %p42 = scmp.eq.s32.totalorder %s9, 0
    %p43 = por %p41, %p42
    %p44 = scmp.ne.s32.totalorder %s33, %s36
    %p45 = scmp.eq.s32.totalorder %s14, 1
    %p46 = por %p44, %p45
    %p47 = scmp.ne.s32.totalorder %s36, %s37
    %p48 = scmp.eq.s32.totalorder %s14, 0
    %p49 = por %p47, %p48
    %p50 = scmp.ne.s32.totalorder %s36, %s37
    %p51 = scmp.eq.s32.totalorder %s15, 1
    %p52 = por %p50, %p51
    %p54 = scmp.ne.s32.totalorder %s37, %s53
    %p55 = scmp.eq.s32.totalorder %s15, 0
    %p56 = por %p54, %p55
    %s58 = sadd.s32 %s57, 1
    %p61 = scmp.eq.s32.totalorder %s9, 1
    %p62 = scmp.ne.s32.totalorder %s57, %s59
    %p63 = scmp.eq.s32.totalorder %s9, 0
    %p64 = por %p62, %p63
    %p65 = scmp.ne.s32.totalorder %s57, %s59
    %p66 = scmp.eq.s32.totalorder %s14, 1
    %p67 = por %p65, %p66
    %p68 = scmp.ne.s32.totalorder %s59, %s60
    %p69 = scmp.eq.s32.totalorder %s14, 0
    %p70 = por %p68, %p69
    %p71 = scmp.ne.s32.totalorder %s59, %s60
    %p72 = scmp.eq.s32.totalorder %s15, 1
    %p73 = por %p71, %p72
    %p75 = scmp.ne.s32.totalorder %s60, %s74
    %p76 = scmp.eq.s32.totalorder %s15, 0
    %p77 = por %p75, %p76
    %s79 = sadd.s32 %s78, 1
    %p82 = scmp.eq.s32.totalorder %s9, 1
    %p83 = scmp.ne.s32.totalorder %s78, %s80
    %p84 = scmp.eq.s32.totalorder %s9, 0
    %p85 = por %p83, %p84
    %p86 = scmp.ne.s32.totalorder %s78, %s80
    %p87 = scmp.eq.s32.totalorder %s14, 1
    %p88 = por %p86, %p87
    %p89 = scmp.ne.s32.totalorder %s80, %s81
    %p90 = scmp.eq.s32.totalorder %s14, 0
    %p91 = por %p89, %p90
    %p92 = scmp.ne.s32.totalorder %s80, %s81
    %p93 = scmp.eq.s32.totalorder %s15, 1
    %p94 = por %p92, %p93
    %p96 = scmp.ne.s32.totalorder %s81, %s95
    %p97 = scmp.eq.s32.totalorder %s15, 0
    %p98 = por %p96, %p97
    %s99 = ssub.s32 %s16, %s28
    %s100 = ssub.s32 %s17, %s24
    %s101 = sor.u32 %s99, %s100
    %p102 = scmp.eq.s32.totalorder %s101, 0
    %s104 = sadd.s32 %s103, 1
    %s105 = scalar_select %p102, %s103, %s104
    %p108 = pneg %p102
    %p109 = scmp.eq.s32.totalorder %s9, 1
    %p110 = por %p108, %p109
    %p111 = scmp.ne.s32.totalorder %s103, %s106
    %p112 = scmp.eq.s32.totalorder %s9, 0
    %p113 = por %p111, %p112
    %p114 = scmp.ne.s32.totalorder %s103, %s106
    %p115 = scmp.eq.s32.totalorder %s14, 1
    %p116 = por %p114, %p115
    %p117 = scmp.ne.s32.totalorder %s106, %s107
    %p118 = scmp.eq.s32.totalorder %s14, 0
    %p119 = por %p117, %p118
    %p120 = scmp.ne.s32.totalorder %s106, %s107
    %p121 = scmp.eq.s32.totalorder %s15, 1
    %p122 = por %p120, %p121
    %p124 = scmp.ne.s32.totalorder %s107, %s123
    %p125 = scmp.eq.s32.totalorder %s15, 0
    %p126 = por %p124, %p125
    %p127 = scmp.le.s32.totalorder 1, %s9
    %p128 = scmp.lt.s32.totalorder %s9, 3
    %p129 = pnand %p127, %p128
    %p130 = pneg %p129
    // Predicated region
    $region9: #{conv_module_forward.1} parent=5 // pred_check
      _
    $region10: #{conv_module_forward.1} parent=5 // pred_check_branch
      %132 = sbr.rel (%p129) target = $region12
    $region11: #{conv_module_forward.1} parent=5 // pred_region
      %s133 = ssub.s32 %s9, 1
      // Predicated region
      $region13: #{conv_module_forward.1} parent=11 // pred_check
        %p134 = pneg %p70
      $region14: #{conv_module_forward.1} parent=11 // pred_check_branch
        %136 = sbr.rel (%p134) target = $region16
      $region15: #{conv_module_forward.1} parent=11 // pred_region
        _
      $region16: #{conv_module_forward.1} parent=11 // pred_fallthru
        _
      // Predicated region
      $region17: #{conv_module_forward.1} parent=11 // pred_check
        %p137 = pneg %p91
      $region18: #{conv_module_forward.1} parent=11 // pred_check_branch
        %139 = sbr.rel (%p137) target = $region20
      $region19: #{conv_module_forward.1} parent=11 // pred_region
        _
      $region20: #{conv_module_forward.1} parent=11 // pred_fallthru
        _
    $region12: #{conv_module_forward.1} parent=5 // pred_fallthru
      _
    %p140 = scmp.lt.s32.totalorder %s9, 2
    // Predicated region
    $region21: #{conv_module_forward.1} parent=5 // pred_check
      %p141 = pneg %p140
    $region22: #{conv_module_forward.1} parent=5 // pred_check_branch
      %143 = sbr.rel (%p141) target = $region24
    $region23: #{conv_module_forward.1} parent=5 // pred_region
      // Predicated region
      $region25: #{conv_module_forward.1} parent=23 // pred_check
        %p144 = pneg %p43
      $region26: #{conv_module_forward.1} parent=23 // pred_check_branch
        %146 = sbr.rel (%p144) target = $region28
      $region27: #{conv_module_forward.1} parent=23 // pred_region
        %s147 = smul.u32 32, %s17
        %p148 = scmp.lt.s32.totalorder %s16, 1
        %s149 = scalar_select %p148, %s16, 1
        %p150 = scmp.lt.s32.totalorder %s147, 31
        %s151 = scalar_select %p150, %s147, 31
        %s152 = smul.addr %s149, 32
        %s153 = sadd.s32 %s151, %s152
        %s154 = smul.addr %s153, 4
        %s155 = scalar_lea.vmem %s0, %s154
        %s156 = smul.u32 32, %s17
      $region28: #{conv_module_forward.1} parent=23 // pred_fallthru
        _
    $region24: #{conv_module_forward.1} parent=5 // pred_fallthru
      _
    %p157 = scmp.le.s32.totalorder 1, %s9
    %p158 = scmp.lt.s32.totalorder %s9, 3
    %p159 = pnand %p157, %p158
    %p160 = pneg %p159
    // Predicated region
    $region29: #{conv_module_forward.1} parent=5 // pred_check
      _
    $region30: #{conv_module_forward.1} parent=5 // pred_check_branch
      %162 = sbr.rel (%p159) target = $region32
    $region31: #{conv_module_forward.1} parent=5 // pred_region
      %s163 = ssub.s32 %s9, 1
      %s164 = smul.u32 32, %s19
      %p165 = scmp.lt.s32.totalorder %s18, 1
      %s166 = scalar_select %p165, %s18, 1
      %p167 = scmp.lt.s32.totalorder %s164, 31
      %s168 = scalar_select %p167, %s164, 31
      %s169 = smul.addr %s166, 32
      %s170 = sadd.s32 %s168, %s169
      %s171 = smul.addr %s170, 4
      %s172 = scalar_lea.vmem %s0, %s171
      %p173 = pneg %p49
      %p174 = pneg %p46
      %p175 = pneg %p70
      %p176 = pneg %p67
      %p177 = pneg %p91
      %p178 = pneg %p88
      %p179 = pneg %p119
      %p180 = pneg %p116
      %s181 = smul.u32 32, %s19
      %p182 = scmp.lt.s32.totalorder %s18, 1
      %s183 = scalar_select %p182, %s18, 1
      %p184 = scmp.lt.s32.totalorder %s181, 31
      %s185 = scalar_select %p184, %s181, 31
      %s186 = smul.addr %s183, 32
      %s187 = sadd.s32 %s185, %s186
      %s188 = smul.addr %s187, 4
      %s189 = scalar_lea.vmem %s3, %s188
      %s190 = smul.u32 32, %s19
      %p191 = scmp.lt.s32.totalorder %s18, 1
      %s192 = scalar_select %p191, %s18, 1
      %p193 = scmp.lt.s32.totalorder %s190, 31
      %s194 = scalar_select %p193, %s190, 31
      %s195 = smul.addr %s192, 32
      %s196 = sadd.s32 %s194, %s195
      %s197 = smul.addr %s196, 4
      %s198 = scalar_lea.vmem %s0, %s197
      %s199 = smul.u32 32, %s19
      %s200 = smul.u32 32, %s19
      %p201 = scmp.lt.s32.totalorder %s18, 1
      %s202 = scalar_select %p201, %s18, 1
      %p203 = scmp.lt.s32.totalorder %s200, 31
      %s204 = scalar_select %p203, %s200, 31
      %s205 = smul.addr %s202, 32
      %s206 = sadd.s32 %s204, %s205
      %s207 = smul.addr %s206, 4
      %s208 = scalar_lea.vmem %s3, %s207
      %s209 = smul.u32 32, %s19
      %v211 = vld [vmem:[%s198] sm:$0xf]
      %v212 = vld [vmem:[%s198 + $0x4] sm:$0xf]
      %v213 = vld [vmem:[%s198 + $0x8] sm:$0xf]
      %v214 = vld [vmem:[%s198 + $0xc] sm:$0xf]
      %v215 = vld [vmem:[%s198 + $0x10] sm:$0xf]
      %v216 = vld [vmem:[%s198 + $0x14] sm:$0xf]
      %v217 = vld [vmem:[%s198 + $0x18] sm:$0xf]
      %v218 = vld [vmem:[%s198 + $0x1c] sm:$0xf]
      %v219 = vld [vmem:[%s198 + $0x20] sm:$0xf]
      %v220 = vld [vmem:[%s198 + $0x24] sm:$0xf]
      %v221 = vld [vmem:[%s198 + $0x28] sm:$0xf]
      %v222 = vld [vmem:[%s198 + $0x2c] sm:$0xf]
      %v223 = vld [vmem:[%s198 + $0x30] sm:$0xf]
      %v224 = vld [vmem:[%s198 + $0x34] sm:$0xf]
      %v225 = vld [vmem:[%s198 + $0x38] sm:$0xf]
      %v226 = vld [vmem:[%s198 + $0x3c] sm:$0xf]
      %v227 = vld [vmem:[%s198 + $0x40] sm:$0xf]
      %v228 = vld [vmem:[%s198 + $0x44] sm:$0xf]
      %v229 = vld [vmem:[%s198 + $0x48] sm:$0xf]
      %v230 = vld [vmem:[%s198 + $0x4c] sm:$0xf]
      %v231 = vld [vmem:[%s198 + $0x50] sm:$0xf]
      %v232 = vld [vmem:[%s198 + $0x54] sm:$0xf]
      %v233 = vld [vmem:[%s198 + $0x58] sm:$0xf]
      %v234 = vld [vmem:[%s198 + $0x5c] sm:$0xf]
      %v235 = vld [vmem:[%s198 + $0x60] sm:$0xf]
      %v236 = vld [vmem:[%s198 + $0x64] sm:$0xf]
      %v237 = vld [vmem:[%s198 + $0x68] sm:$0xf]
      %v238 = vld [vmem:[%s198 + $0x6c] sm:$0xf]
      %v239 = vld [vmem:[%s198 + $0x70] sm:$0xf]
      %v240 = vld [vmem:[%s198 + $0x74] sm:$0xf]
      %v241 = vld [vmem:[%s198 + $0x78] sm:$0xf]
      %v242 = vld [vmem:[%s198 + $0x7c] sm:$0xf]
      %v243 = vld [vmem:[%s1] sm:$0xf]
      %v244 = vld [vmem:[%s1 + $0x4] sm:$0xf]
      %v245 = vld [vmem:[%s1 + $0x8] sm:$0xf]
      %v246 = vld [vmem:[%s1 + $0xc] sm:$0xf]
      %v247 = vld [vmem:[%s1 + $0x10] sm:$0x3]
      %v248 = vld [vmem:[%s2] sm:$0x1]
      %v250 = vlaneseq
      %v251 = vshrl.u32 %v250, 7
      %v252 = vsub.s32 0, %v251
      %v253 = vrot.slane %v248, %v252
      %v287 = vunpack.c.l.b16 %v211
      %v288 = vunpack.c.l.b16 %v212
      %v289 = vunpack.c.l.b16 %v213
      %v290 = vunpack.c.l.b16 %v214
      %v291 = vunpack.c.l.b16 %v215
      %v292 = vunpack.c.l.b16 %v216
      %v293 = vunpack.c.l.b16 %v217
      %v294 = vunpack.c.l.b16 %v218
      %v295 = vunpack.c.l.b16 %v219
      %v296 = vunpack.c.l.b16 %v220
      %v297 = vunpack.c.l.b16 %v221
      %v298 = vunpack.c.l.b16 %v222
      %v299 = vunpack.c.l.b16 %v223
      %v300 = vunpack.c.l.b16 %v224
      %v301 = vunpack.c.l.b16 %v225
      %v302 = vunpack.c.l.b16 %v226
      %v303 = vunpack.c.l.b16 %v227
      %v304 = vunpack.c.l.b16 %v228
      %v305 = vunpack.c.l.b16 %v229
      %v306 = vunpack.c.l.b16 %v230
      %v307 = vunpack.c.l.b16 %v231
      %v308 = vunpack.c.l.b16 %v232
      %v309 = vunpack.c.l.b16 %v233
      %v310 = vunpack.c.l.b16 %v234
      %v311 = vunpack.c.l.b16 %v235
      %v312 = vunpack.c.l.b16 %v236
      %v313 = vunpack.c.l.b16 %v237
      %v314 = vunpack.c.l.b16 %v238
      %v315 = vunpack.c.l.b16 %v239
      %v316 = vunpack.c.l.b16 %v240
      %v317 = vunpack.c.l.b16 %v241
      %v318 = vunpack.c.l.b16 %v242
      %v319 = vpack.c.b16 %v288, %v287
      %v320 = vpack.c.b16 %v290, %v289
      %v321 = vpack.c.b16 %v292, %v291
      %v322 = vpack.c.b16 %v294, %v293
      %v323 = vpack.c.b16 %v296, %v295
      %v324 = vpack.c.b16 %v298, %v297
      %v325 = vpack.c.b16 %v300, %v299
      %v326 = vpack.c.b16 %v302, %v301
      %v327 = vpack.c.b16 %v304, %v303
      %v328 = vpack.c.b16 %v306, %v305
      %v329 = vpack.c.b16 %v308, %v307
      %v330 = vpack.c.b16 %v310, %v309
      %v331 = vpack.c.b16 %v312, %v311
      %v332 = vpack.c.b16 %v314, %v313
      %v333 = vpack.c.b16 %v316, %v315
      %v334 = vpack.c.b16 %v318, %v317
      %v340 = vunpack.c.l.b16 %v243
      %v341 = vunpack.c.l.b16 %v244
      %v342 = vunpack.c.l.b16 %v245
      %v343 = vunpack.c.l.b16 %v246
      %v344 = vunpack.c.l.b16 %v247
      %v345 = vpack.c.b16 %v341, %v340
      %v346 = vpack.c.b16 %v343, %v342
      %v347 = vpack.c.b16 %v344, %v344
      %vm350 = vcmask 293888
      %v352 = vsel %vm350, %v319, 0
      %v355 = vsel %vm350, %v320, 0
      %v358 = vsel %vm350, %v321, 0
      %v361 = vsel %vm350, %v322, 0
      %v364 = vsel %vm350, %v323, 0
      %v367 = vsel %vm350, %v324, 0
      %v370 = vsel %vm350, %v325, 0
      %v373 = vsel %vm350, %v326, 0
      %v376 = vsel %vm350, %v327, 0
      %v379 = vsel %vm350, %v328, 0
      %v382 = vsel %vm350, %v329, 0
      %v385 = vsel %vm350, %v330, 0
      %v388 = vsel %vm350, %v331, 0
      %v391 = vsel %vm350, %v332, 0
      %v394 = vsel %vm350, %v333, 0
      %v397 = vsel %vm350, %v334, 0
      %vm399 = vcmask 1041408
      %v401 = vsel %vm399, %v347, 0
      %403 = vmatprep.subr.bf16.mxu0 0
      %404 = vmatpush1.bf16.msra.mxu0 %v345
      %405 = vmatprep.subr.bf16.mxu0 0
      %406 = vmatpush1.bf16.msra.mxu0 %v346
      %407 = vmatprep.subr.bf16.mxu0 0
      %408 = vmatpush1.bf16.msra.mxu0 %v401
      %409 = vmatprep.subr.bf16.mxu0 0
      %410 = vmatpush1.bf16.msra.mxu0 0
      %411 = vmatprep.subr.bf16.mxu0 0
      %412 = vmatpush1.bf16.msra.mxu0 0
      %413 = vmatprep.subr.bf16.mxu0 0
      %414 = vmatpush1.bf16.msra.mxu0 0
      %415 = vmatprep.subr.bf16.mxu0 0
      %416 = vmatpush1.bf16.msra.mxu0 0
      %417 = vmatprep.subr.bf16.mxu0 0
      %418 = vmatpush1.bf16.msra.mxu0 0
      %419 = vmatprep.subr.bf16.mxu0 0
      %420 = vmatpush1.bf16.msra.mxu0 0
      %421 = vmatprep.subr.bf16.mxu0 0
      %422 = vmatpush1.bf16.msra.mxu0 0
      %423 = vmatprep.subr.bf16.mxu0 0
      %424 = vmatpush1.bf16.msra.mxu0 0
      %425 = vmatprep.subr.bf16.mxu0 0
      %426 = vmatpush1.bf16.msra.mxu0 0
      %427 = vmatprep.subr.bf16.mxu0 0
      %428 = vmatpush1.bf16.msra.mxu0 0
      %429 = vmatprep.subr.bf16.mxu0 0
      %430 = vmatpush1.bf16.msra.mxu0 0
      %431 = vmatprep.subr.bf16.mxu0 0
      %432 = vmatpush1.bf16.msra.mxu0 0
      %433 = vmatprep.subr.bf16.mxu0 0
      %434 = vmatpush1.bf16.msra.mxu0 0
      %435 = vmatprep.mubr.bf16.mxu0 0
      %436 = vmatmul.mubr.bf16.gmra.mrb[0].mxu0 %v352
      %v437 = vpop.f32.mrb[0].mxu0
      %v438 = vadd.f32 %v253, %v437
      %v439 = vpop.f32.mrb[0].mxu0
      %v440 = vpop.f32.mrb[0].mxu0
      %v441 = vadd.f32 %v253, %v440
      %v442 = vpop.f32.mrb[0].mxu0
      %443 = vmatprep.mubr.bf16.mxu0 0
      %444 = vmatmul.mubr.bf16.gmra.mrb[0].mxu0 %v355
      %v445 = vpop.f32.mrb[0].mxu0
      %v446 = vadd.f32 %v253, %v445
      %v447 = vpop.f32.mrb[0].mxu0
      %v448 = vpop.f32.mrb[0].mxu0
      %v449 = vadd.f32 %v253, %v448
      %v450 = vpop.f32.mrb[0].mxu0
      %451 = vmatprep.mubr.bf16.mxu0 0
      %452 = vmatmul.mubr.bf16.gmra.mrb[0].mxu0 %v358
      %v453 = vpop.f32.mrb[0].mxu0
      %v454 = vadd.f32 %v253, %v453
      %v455 = vpop.f32.mrb[0].mxu0
      %v456 = vpop.f32.mrb[0].mxu0
      %v457 = vadd.f32 %v253, %v456
      %v458 = vpop.f32.mrb[0].mxu0
      %459 = vmatprep.mubr.bf16.mxu0 0
      %460 = vmatmul.mubr.bf16.gmra.mrb[0].mxu0 %v361
      %v461 = vpop.f32.mrb[0].mxu0
      %v462 = vadd.f32 %v253, %v461
      %v463 = vpop.f32.mrb[0].mxu0
      %v464 = vpop.f32.mrb[0].mxu0
      %v465 = vadd.f32 %v253, %v464
      %v466 = vpop.f32.mrb[0].mxu0
      %467 = vmatprep.mubr.bf16.mxu0 0
      %468 = vmatmul.mubr.bf16.gmra.mrb[0].mxu0 %v364
      %v469 = vpop.f32.mrb[0].mxu0
      %v470 = vadd.f32 %v253, %v469
      %v471 = vpop.f32.mrb[0].mxu0
      %v472 = vpop.f32.mrb[0].mxu0
      %v473 = vadd.f32 %v253, %v472
      %v474 = vpop.f32.mrb[0].mxu0
      %475 = vmatprep.mubr.bf16.mxu0 0
      %476 = vmatmul.mubr.bf16.gmra.mrb[0].mxu0 %v367
      %v477 = vpop.f32.mrb[0].mxu0
      %v478 = vadd.f32 %v253, %v477
      %v479 = vpop.f32.mrb[0].mxu0
      %v480 = vpop.f32.mrb[0].mxu0
      %v481 = vadd.f32 %v253, %v480
      %v482 = vpop.f32.mrb[0].mxu0
      %483 = vmatprep.mubr.bf16.mxu0 0
      %484 = vmatmul.mubr.bf16.gmra.mrb[0].mxu0 %v370
      %v485 = vpop.f32.mrb[0].mxu0
      %v486 = vadd.f32 %v253, %v485
      %v487 = vpop.f32.mrb[0].mxu0
      %v488 = vpop.f32.mrb[0].mxu0
      %v489 = vadd.f32 %v253, %v488
      %v490 = vpop.f32.mrb[0].mxu0
      %491 = vmatprep.mubr.bf16.mxu0 0
      %492 = vmatmul.mubr.bf16.gmra.mrb[0].mxu0 %v373
      %v493 = vpop.f32.mrb[0].mxu0
      %v494 = vadd.f32 %v253, %v493
      %v495 = vpop.f32.mrb[0].mxu0
      %v496 = vpop.f32.mrb[0].mxu0
      %v497 = vadd.f32 %v253, %v496
      %v498 = vpop.f32.mrb[0].mxu0
      %499 = vmatprep.mubr.bf16.mxu0 0
      %500 = vmatmul.mubr.bf16.gmra.mrb[0].mxu0 %v376
      %v501 = vpop.f32.mrb[0].mxu0
      %v502 = vadd.f32 %v253, %v501
      %v503 = vpop.f32.mrb[0].mxu0
      %v504 = vpop.f32.mrb[0].mxu0
      %v505 = vadd.f32 %v253, %v504
      %v506 = vpop.f32.mrb[0].mxu0
      %507 = vmatprep.mubr.bf16.mxu0 0
      %508 = vmatmul.mubr.bf16.gmra.mrb[0].mxu0 %v379
      %v509 = vpop.f32.mrb[0].mxu0
      %v510 = vadd.f32 %v253, %v509
      %v511 = vpop.f32.mrb[0].mxu0
      %v512 = vpop.f32.mrb[0].mxu0
      %v513 = vadd.f32 %v253, %v512
      %v514 = vpop.f32.mrb[0].mxu0
      %515 = vmatprep.mubr.bf16.mxu0 0
      %516 = vmatmul.mubr.bf16.gmra.mrb[0].mxu0 %v382
      %v517 = vpop.f32.mrb[0].mxu0
      %v518 = vadd.f32 %v253, %v517
      %v519 = vpop.f32.mrb[0].mxu0
      %v520 = vpop.f32.mrb[0].mxu0
      %v521 = vadd.f32 %v253, %v520
      %v522 = vpop.f32.mrb[0].mxu0
      %523 = vmatprep.mubr.bf16.mxu0 0
      %524 = vmatmul.mubr.bf16.gmra.mrb[0].mxu0 %v385
      %v525 = vpop.f32.mrb[0].mxu0
      %v526 = vadd.f32 %v253, %v525
      %v527 = vpop.f32.mrb[0].mxu0
      %v528 = vpop.f32.mrb[0].mxu0
      %v529 = vadd.f32 %v253, %v528
      %v530 = vpop.f32.mrb[0].mxu0
      %531 = vmatprep.mubr.bf16.mxu0 0
      %532 = vmatmul.mubr.bf16.gmra.mrb[0].mxu0 %v388
      %v533 = vpop.f32.mrb[0].mxu0
      %v534 = vadd.f32 %v253, %v533
      %v535 = vpop.f32.mrb[0].mxu0
      %v536 = vpop.f32.mrb[0].mxu0
      %v537 = vadd.f32 %v253, %v536
      %v538 = vpop.f32.mrb[0].mxu0
      %539 = vmatprep.mubr.bf16.mxu0 0
      %540 = vmatmul.mubr.bf16.gmra.mrb[0].mxu0 %v391
      %v541 = vpop.f32.mrb[0].mxu0
      %v542 = vadd.f32 %v253, %v541
      %v543 = vpop.f32.mrb[0].mxu0
      %v544 = vpop.f32.mrb[0].mxu0
      %v545 = vadd.f32 %v253, %v544
      %v546 = vpop.f32.mrb[0].mxu0
      %547 = vmatprep.mubr.bf16.mxu0 0
      %548 = vmatmul.mubr.bf16.gmra.mrb[0].mxu0 %v394
      %v549 = vpop.f32.mrb[0].mxu0
      %v550 = vadd.f32 %v253, %v549
      %v551 = vpop.f32.mrb[0].mxu0
      %v552 = vpop.f32.mrb[0].mxu0
      %v553 = vadd.f32 %v253, %v552
      %v554 = vpop.f32.mrb[0].mxu0
      %555 = vmatprep.mubr.bf16.mxu0 0
      %556 = vmatmul.mubr.bf16.gmra.mrb[0].mxu0 %v397
      %v557 = vpop.f32.mrb[0].mxu0
      %v558 = vadd.f32 %v253, %v557
      %v559 = vpop.f32.mrb[0].mxu0
      %v560 = vpop.f32.mrb[0].mxu0
      %v561 = vadd.f32 %v253, %v560
      %v562 = vpop.f32.mrb[0].mxu0
      %563 = vdwg.mxu0
      %v564 = vmax.f32 %v438, 0.0
      %v565 = vmax.f32 %v441, 0.0
      %v566 = vmax.f32 %v446, 0.0
      %v567 = vmax.f32 %v449, 0.0
      %v568 = vmax.f32 %v454, 0.0
      %v569 = vmax.f32 %v457, 0.0
      %v570 = vmax.f32 %v462, 0.0
      %v571 = vmax.f32 %v465, 0.0
      %v572 = vmax.f32 %v470, 0.0
      %v573 = vmax.f32 %v473, 0.0
      %v574 = vmax.f32 %v478, 0.0
      %v575 = vmax.f32 %v481, 0.0
      %v576 = vmax.f32 %v486, 0.0
      %v577 = vmax.f32 %v489, 0.0
      %v578 = vmax.f32 %v494, 0.0
      %v579 = vmax.f32 %v497, 0.0
      %v580 = vmax.f32 %v502, 0.0
      %v581 = vmax.f32 %v505, 0.0
      %v582 = vmax.f32 %v510, 0.0
      %v583 = vmax.f32 %v513, 0.0
      %v584 = vmax.f32 %v518, 0.0
      %v585 = vmax.f32 %v521, 0.0
      %v586 = vmax.f32 %v526, 0.0
      %v587 = vmax.f32 %v529, 0.0
      %v588 = vmax.f32 %v534, 0.0
      %v589 = vmax.f32 %v537, 0.0
      %v590 = vmax.f32 %v542, 0.0
      %v591 = vmax.f32 %v545, 0.0
      %v592 = vmax.f32 %v550, 0.0
      %v593 = vmax.f32 %v553, 0.0
      %v594 = vmax.f32 %v558, 0.0
      %v595 = vmax.f32 %v561, 0.0
      %v596 = vpack.c.bf16 %v565, %v564
      %v597 = vpack.c.bf16 %v567, %v566
      %v598 = vpack.c.bf16 %v569, %v568
      %v599 = vpack.c.bf16 %v571, %v570
      %v600 = vpack.c.bf16 %v573, %v572
      %v601 = vpack.c.bf16 %v575, %v574
      %v602 = vpack.c.bf16 %v577, %v576
      %v603 = vpack.c.bf16 %v579, %v578
      %v604 = vpack.c.bf16 %v581, %v580
      %v605 = vpack.c.bf16 %v583, %v582
      %v606 = vpack.c.bf16 %v585, %v584
      %v607 = vpack.c.bf16 %v587, %v586
      %v608 = vpack.c.bf16 %v589, %v588
      %v609 = vpack.c.bf16 %v591, %v590
      %v610 = vpack.c.bf16 %v593, %v592
      %v611 = vpack.c.bf16 %v595, %v594
      %v628 = vunpack.c.l.b16 %v596
      %v629 = vunpack.c.h.b16 %v596
      %v630 = vunpack.c.l.b16 %v597
      %v631 = vunpack.c.h.b16 %v597
      %v632 = vunpack.c.l.b16 %v598
      %v633 = vunpack.c.h.b16 %v598
      %v634 = vunpack.c.l.b16 %v599
      %v635 = vunpack.c.h.b16 %v599
      %v636 = vunpack.c.l.b16 %v600
      %v637 = vunpack.c.h.b16 %v600
      %v638 = vunpack.c.l.b16 %v601
      %v639 = vunpack.c.h.b16 %v601
      %v640 = vunpack.c.l.b16 %v602
      %v641 = vunpack.c.h.b16 %v602
      %v642 = vunpack.c.l.b16 %v603
      %v643 = vunpack.c.h.b16 %v603
      %v644 = vunpack.c.l.b16 %v604
      %v645 = vunpack.c.h.b16 %v604
      %v646 = vunpack.c.l.b16 %v605
      %v647 = vunpack.c.h.b16 %v605
      %v648 = vunpack.c.l.b16 %v606
      %v649 = vunpack.c.h.b16 %v606
      %v650 = vunpack.c.l.b16 %v607
      %v651 = vunpack.c.h.b16 %v607
      %v652 = vunpack.c.l.b16 %v608
      %v653 = vunpack.c.h.b16 %v608
      %v654 = vunpack.c.l.b16 %v609
      %v655 = vunpack.c.h.b16 %v609
      %v656 = vunpack.c.l.b16 %v610
      %v657 = vunpack.c.h.b16 %v610
      %v658 = vunpack.c.l.b16 %v611
      %v659 = vunpack.c.h.b16 %v611
      %v660 = vpack.c.b16 %v628, %v628
      %v661 = vpack.c.b16 %v629, %v629
      %v662 = vpack.c.b16 %v630, %v630
      %v663 = vpack.c.b16 %v631, %v631
      %v664 = vpack.c.b16 %v632, %v632
      %v665 = vpack.c.b16 %v633, %v633
      %v666 = vpack.c.b16 %v634, %v634
      %v667 = vpack.c.b16 %v635, %v635
      %v668 = vpack.c.b16 %v636, %v636
      %v669 = vpack.c.b16 %v637, %v637
      %v670 = vpack.c.b16 %v638, %v638
      %v671 = vpack.c.b16 %v639, %v639
      %v672 = vpack.c.b16 %v640, %v640
      %v673 = vpack.c.b16 %v641, %v641
      %v674 = vpack.c.b16 %v642, %v642
      %v675 = vpack.c.b16 %v643, %v643
      %v676 = vpack.c.b16 %v644, %v644
      %v677 = vpack.c.b16 %v645, %v645
      %v678 = vpack.c.b16 %v646, %v646
      %v679 = vpack.c.b16 %v647, %v647
      %v680 = vpack.c.b16 %v648, %v648
      %v681 = vpack.c.b16 %v649, %v649
      %v682 = vpack.c.b16 %v650, %v650
      %v683 = vpack.c.b16 %v651, %v651
      %v684 = vpack.c.b16 %v652, %v652
      %v685 = vpack.c.b16 %v653, %v653
      %v686 = vpack.c.b16 %v654, %v654
      %v687 = vpack.c.b16 %v655, %v655
      %v688 = vpack.c.b16 %v656, %v656
      %v689 = vpack.c.b16 %v657, %v657
      %v690 = vpack.c.b16 %v658, %v658
      %v691 = vpack.c.b16 %v659, %v659
      %724 = vst [vmem:[%s208] sm:$0xf] %v660
      %725 = vst [vmem:[%s208 + $0x4] sm:$0xf] %v661
      %726 = vst [vmem:[%s208 + $0x8] sm:$0xf] %v662
      %727 = vst [vmem:[%s208 + $0xc] sm:$0xf] %v663
      %728 = vst [vmem:[%s208 + $0x10] sm:$0xf] %v664
      %729 = vst [vmem:[%s208 + $0x14] sm:$0xf] %v665
      %730 = vst [vmem:[%s208 + $0x18] sm:$0xf] %v666
      %731 = vst [vmem:[%s208 + $0x1c] sm:$0xf] %v667
      %732 = vst [vmem:[%s208 + $0x20] sm:$0xf] %v668
      %733 = vst [vmem:[%s208 + $0x24] sm:$0xf] %v669
      %734 = vst [vmem:[%s208 + $0x28] sm:$0xf] %v670
      %735 = vst [vmem:[%s208 + $0x2c] sm:$0xf] %v671
      %736 = vst [vmem:[%s208 + $0x30] sm:$0xf] %v672
      %737 = vst [vmem:[%s208 + $0x34] sm:$0xf] %v673
      %738 = vst [vmem:[%s208 + $0x38] sm:$0xf] %v674
      %739 = vst [vmem:[%s208 + $0x3c] sm:$0xf] %v675
      %740 = vst [vmem:[%s208 + $0x40] sm:$0xf] %v676
      %741 = vst [vmem:[%s208 + $0x44] sm:$0xf] %v677
      %742 = vst [vmem:[%s208 + $0x48] sm:$0xf] %v678
      %743 = vst [vmem:[%s208 + $0x4c] sm:$0xf] %v679
      %744 = vst [vmem:[%s208 + $0x50] sm:$0xf] %v680
      %745 = vst [vmem:[%s208 + $0x54] sm:$0xf] %v681
      %746 = vst [vmem:[%s208 + $0x58] sm:$0xf] %v682
      %747 = vst [vmem:[%s208 + $0x5c] sm:$0xf] %v683
      %748 = vst [vmem:[%s208 + $0x60] sm:$0xf] %v684
      %749 = vst [vmem:[%s208 + $0x64] sm:$0xf] %v685
      %750 = vst [vmem:[%s208 + $0x68] sm:$0xf] %v686
      %751 = vst [vmem:[%s208 + $0x6c] sm:$0xf] %v687
      %752 = vst [vmem:[%s208 + $0x70] sm:$0xf] %v688
      %753 = vst [vmem:[%s208 + $0x74] sm:$0xf] %v689
      %754 = vst [vmem:[%s208 + $0x78] sm:$0xf] %v690
      %755 = vst [vmem:[%s208 + $0x7c] sm:$0xf] %v691
      %s756 = smul.u32 32, %s19
      %p757 = scmp.lt.s32.totalorder %s18, 1
      %s758 = scalar_select %p757, %s18, 1
      %p759 = scmp.lt.s32.totalorder %s756, 31
      %s760 = scalar_select %p759, %s756, 31
      %s761 = smul.addr %s758, 32
      %s762 = sadd.s32 %s760, %s761
      %s763 = smul.addr %s762, 4
      %s764 = scalar_lea.vmem %s3, %s763
      // Predicated region
      $region33: #{conv_module_forward.1} parent=31 // pred_check
        %p765 = pneg %p116
      $region34: #{conv_module_forward.1} parent=31 // pred_check_branch
        %767 = sbr.rel (%p765) target = $region36
      $region35: #{conv_module_forward.1} parent=31 // pred_region
        %s768 = smul.u32 32, %s19
      $region36: #{conv_module_forward.1} parent=31 // pred_fallthru
        _
    $region32: #{conv_module_forward.1} parent=5 // pred_fallthru
      _
    %p769 = scmp.le.s32.totalorder 2, %s9
    // Predicated region
    $region37: #{conv_module_forward.1} parent=5 // pred_check
      %p770 = pneg %p769
    $region38: #{conv_module_forward.1} parent=5 // pred_check_branch
      %772 = sbr.rel (%p770) target = $region40
    $region39: #{conv_module_forward.1} parent=5 // pred_region
      %s773 = ssub.s32 %s9, 2
      // Predicated region
      $region41: #{conv_module_forward.1} parent=39 // pred_check
        %p774 = pneg %p122
      $region42: #{conv_module_forward.1} parent=39 // pred_check_branch
        %776 = sbr.rel (%p774) target = $region44
      $region43: #{conv_module_forward.1} parent=39 // pred_region
        %s777 = smul.u32 32, %s21
        %p778 = scmp.lt.s32.totalorder %s20, 1
        %s779 = scalar_select %p778, %s20, 1
        %p780 = scmp.lt.s32.totalorder %s777, 31
        %s781 = scalar_select %p780, %s777, 31
        %s782 = smul.addr %s779, 32
        %s783 = sadd.s32 %s781, %s782
        %s784 = smul.addr %s783, 4
        %s785 = scalar_lea.vmem %s3, %s784
      $region44: #{conv_module_forward.1} parent=39 // pred_fallthru
        _
    $region40: #{conv_module_forward.1} parent=5 // pred_fallthru
      _
  $region6: #{conv_module_forward.1} parent=0 // loop_footer
    %s13 = sadd.s32 1, %s9
  $region7: #{conv_module_forward.1} parent=0 // loop_footer_branch
    %8 = sbr.rel target = $region3
  $region8: #{conv_module_forward.1} parent=0 // loop_exit
    _

</llo_original>
